<compile_context>
chip_gen: v7x
topology: tpu7x:2x2x1
jax: 0.10.0
libtpu: 0.0.40
codegen_flags: <defaults>
</compile_context>

<pallas_src>
import functools

import jax
import jax.numpy as jnp
from jax.experimental import pallas as pl
from jax.experimental.pallas import tpu as pltpu


def _convgru_kernel(xh_ref, h_ref, mb_ref, moh_ref, bias_ref, out_ref, *, K, p):
    """One grid step == `bt` batch elements, row-stacked.

    xh_ref  : (bt*Hp_pad, WpC_pad)   padded cat([x, h]) rows, bf16
    h_ref   : (bt*Hp_pad, WC)        previous state rows (zero past row H), bf16
    mb_ref  : (K, WpC_pad, 2*WC)     banded [w_reset | w_out_x] weights, bf16
    moh_ref : (K, WC, WC)            banded out-gate h-part weights, bf16
    bias_ref: (1, 2*WC)              [b_reset | b_out] lane-tiled, f32
    out_ref : (bt*Hp_pad, WC)        new state rows (rows >= H are discarded)
    """
    N = xh_ref.shape[0]            # bt * Hp_pad   (multiple of 8)
    WC = out_ref.shape[-1]         # W * C_hid
    cdt = xh_ref.dtype             # MXU operand dtype (bf16)

    # --- reset gate + x-contribution of the out gate, fused in one RHS -----
    # acc[r] = sum_kh  xh[r + kh] @ mb[kh]; the +kh row shift is applied to
    # the f32 result with a sublane roll (rows that wrap land in padding).
    xh = xh_ref[...]
    acc = jnp.dot(xh, mb_ref[0], preferred_element_type=jnp.float32)
    for kh in range(1, K):                                  # K is tiny: unrolled
        tap = jnp.dot(xh, mb_ref[kh], preferred_element_type=jnp.float32)
        acc += pltpu.roll(tap, shift=N - kh, axis=0)
    acc += bias_ref[...]                                    # fused bias, once

    reset = jax.nn.sigmoid(acc[:, :WC])                     # (N, WC) f32

    # --- h * reset, computed and cast once (zero on padding rows) ----------
    hr = (h_ref[...].astype(jnp.float32) * reset).astype(cdt)

    # --- out gate: conv(h*reset) via matmul-then-roll -----------------------
    acc_o = acc[:, WC:]
    for kh in range(K):
        tap = jnp.dot(hr, moh_ref[kh], preferred_element_type=jnp.float32)
        d = kh - p
        if d != 0:
            tap = pltpu.roll(tap, shift=(N - d) % N, axis=0)
        acc_o = acc_o + tap

    out_ref[...] = jnp.tanh(acc_o).astype(out_ref.dtype)


def _band_expand(wt, src_w, dst_w, shift):
    """Expand HWIO conv weights into per-kernel-row banded matrices.

    wt: (K, K, C_src, C_out)  ->  M: (K, src_w*C_src, dst_w*C_out) with
        M[kh, s*C_src + c, d*C_out + o] = wt[kh, s - d + shift, c, o]
    (zero when s - d + shift is outside [0, K)).
    """
    Ksz, _, c_src, c_out = wt.shape
    kw = jnp.arange(Ksz)[:, None, None]
    s = jnp.arange(src_w)[None, :, None]
    d = jnp.arange(dst_w)[None, None, :]
    sel = (s - d + shift == kw).astype(wt.dtype)            # (K, src_w, dst_w)
    m = jnp.einsum('ksd,hkco->hscdo', sel, wt)              # (K, s, c, d, o)
    return m.reshape(Ksz, src_w * c_src, dst_w * c_out)


def _round_up(x, m):
    return (x + m - 1) // m * m


def _pick_batch_tile(B, cap=8):
    """Largest divisor of B that keeps >= 2 grid steps (v7x megacore) and a
    bounded VMEM block; falls back to 1."""
    limit = max(1, min(cap, B // 2))
    for bt in range(limit, 0, -1):
        if B % bt == 0:
            return bt
    return 1


def conv_gru_cell_in(x_nhwc, h_nhwc, w_reset, b_reset, w_out, b_out, *, K,
                     compute_dtype=jnp.bfloat16, batch_tile=None):
    """x_nhwc: (B,H,W,C_in), h_nhwc: (B,H,W,C_hid),
    w_*: (K,K,C_in+C_hid,C_hid) HWIO, b_*: (C_hid,).  Returns (B,H,W,C_hid)."""
    if K % 2 != 1:
        raise ValueError("kernel_size must be odd: PyTorch padding=K//2 only "
                         "matches 'same' convolution for odd K")
    B, H, W, C_in = x_nhwc.shape
    C_hid = h_nhwc.shape[-1]
    C = C_in + C_hid
    p = K // 2
    Hp, Wp = H + 2 * p, W + 2 * p
    WC = W * C_hid
    WpC = Wp * C
    WpC_pad = _round_up(WpC, 128)        # dense contraction lanes
    Hp_pad = _round_up(Hp, 8)            # sublane-aligned per-batch row slab
    bt = batch_tile if batch_tile is not None else _pick_batch_tile(B)
    assert B % bt == 0, (B, bt)
    N = bt * Hp_pad

    # --- lane-dense, row-padded activation slabs (bf16 halves DMA bytes) ---
    xh = jnp.concatenate([x_nhwc, h_nhwc], axis=-1)                  # (B,H,W,C)
    xh = jnp.pad(xh, ((0, 0), (p, p), (p, p), (0, 0)))               # (B,Hp,Wp,C)
    xh2d = xh.reshape(B, Hp, WpC)
    xh2d = jnp.pad(xh2d, ((0, 0), (0, Hp_pad - Hp), (0, WpC_pad - WpC)))
    xh2d = xh2d.astype(compute_dtype).reshape(B * Hp_pad, WpC_pad)

    # h rows live at 0..H-1 of each Hp_pad slab; rows >= H MUST be zero so the
    # out-gate roll wrap-around reads exact zeros (SAME-padding semantics).
    h2d = jnp.pad(h_nhwc.reshape(B, H, WC), ((0, 0), (0, Hp_pad - H), (0, 0)))
    h2d = h2d.astype(compute_dtype).reshape(B * Hp_pad, WC)

    # --- banded weight matrices (built once per call in plain JAX; in a real
    # model these would be precomputed per weight update) --------------------
    w_out_x = jnp.concatenate(
        [w_out[:, :, :C_in, :], jnp.zeros_like(w_out[:, :, C_in:, :])], axis=2)
    m_r = _band_expand(w_reset, Wp, W, 0)                    # (K, WpC, WC)
    m_ox = _band_expand(w_out_x, Wp, W, 0)                   # (K, WpC, WC)
    m_both = jnp.concatenate([m_r, m_ox], axis=-1)           # (K, WpC, 2WC)
    m_both = jnp.pad(m_both, ((0, 0), (0, WpC_pad - WpC), (0, 0)))
    m_both = m_both.astype(compute_dtype)
    m_oh = _band_expand(w_out[:, :, C_in:, :], W, W, p).astype(compute_dtype)

    bias = jnp.concatenate([jnp.tile(b_reset, W), jnp.tile(b_out, W)])
    bias = bias.astype(jnp.float32).reshape(1, 2 * WC)

    nbytes = lambda a: a.size * a.dtype.itemsize
    out_itemsize = jnp.dtype(x_nhwc.dtype).itemsize
    cost = pl.CostEstimate(
        flops=2 * B * Hp_pad * K * (WpC_pad * 2 * WC + WC * WC),
        transcendentals=2 * B * Hp_pad * WC,
        bytes_accessed=(nbytes(xh2d) + nbytes(h2d) + nbytes(m_both)
                        + nbytes(m_oh) + nbytes(bias)
                        + B * Hp_pad * WC * out_itemsize),
    )

    kern = functools.partial(_convgru_kernel, K=K, p=p)
    const = lambda shape: pl.BlockSpec(shape, lambda b: (0,) * len(shape))
    grid_spec = pltpu.PrefetchScalarGridSpec(
        num_scalar_prefetch=0,
        grid=(B // bt,),
        in_specs=[
            pl.BlockSpec((N, WpC_pad), lambda b: (b, 0)),    # xh rows
            pl.BlockSpec((N, WC), lambda b: (b, 0)),         # h rows
            const((K, WpC_pad, 2 * WC)),                     # fused banded W
            const((K, WC, WC)),                              # out-gate h band
            const((1, 2 * WC)),                              # fused bias
        ],
        out_specs=pl.BlockSpec((N, WC), lambda b: (b, 0)),
    )

    out2d = pl.pallas_call(
        kern,
        out_shape=jax.ShapeDtypeStruct((B * Hp_pad, WC), x_nhwc.dtype),
        grid_spec=grid_spec,
        compiler_params=pltpu.CompilerParams(
            dimension_semantics=("parallel",),   # batch axis, v7x megacore
            vmem_limit_bytes=32 * 1024 * 1024),
        cost_estimate=cost,
    )(xh2d, h2d, m_both, m_oh, bias)

    # Drop the per-batch row padding and restore NHWC.
    return out2d.reshape(B, Hp_pad, W, C_hid)[:, :H]


def conv_gru_cell_in_ref(x, h, w_reset, b_reset, w_out, b_out, *,
                         compute_dtype=jnp.bfloat16):
    """Pure-JAX reference (NHWC / HWIO) mirroring the PyTorch forward, using
    the same bf16-operand / f32-accumulation arithmetic as the kernel."""
    cd = compute_dtype

    def conv(a, w):
        return jax.lax.conv_general_dilated(
            a.astype(cd), w.astype(cd), window_strides=(1, 1), padding="SAME",
            dimension_numbers=("NHWC", "HWIO", "NHWC"),
            preferred_element_type=jnp.float32)

    reset = jax.nn.sigmoid(conv(jnp.concatenate([x, h], -1), w_reset) + b_reset)
    hr = (h.astype(cd).astype(jnp.float32) * reset).astype(cd)
    return jnp.tanh(conv(jnp.concatenate([x, hr.astype(jnp.float32)], -1),
                         w_out) + b_out)


if __name__ == "__main__":
    # B=4 exercises the batch-tiled path (bt=2 -> 2 grid steps, M=48 rows/matmul).
    B, C_in, C_hid, H, W, K = 4, 4, 8, 16, 16, 3

    key = jax.random.PRNGKey(0)
    kx, kh, kwr, kwo, kbr, kbo = jax.random.split(key, 6)

    # NCHW inputs (PyTorch convention), converted to NHWC for the kernel.
    x_nchw = jax.random.normal(kx, (B, C_in, H, W), jnp.float32)
    h_nchw = jax.random.normal(kh, (B, C_hid, H, W), jnp.float32)
    x = jnp.transpose(x_nchw, (0, 2, 3, 1))
    h = jnp.transpose(h_nchw, (0, 2, 3, 1))

    # Deterministic synthetic parameters (HWIO == transpose of PyTorch OIHW).
    # TODO(synk): orthogonal init not reproduced; deterministic normal weights
    # of the same shapes are used instead.  Biases are nonzero here (they are
    # learnable; zero is only the init value) to exercise the fused-bias path.
    # TODO(synk): prev_state=None zero-init branch not implemented (callers
    # pass an explicit previous state here).
    w_reset = 0.1 * jax.random.normal(kwr, (K, K, C_in + C_hid, C_hid),
                                      jnp.float32)
    w_out = 0.1 * jax.random.normal(kwo, (K, K, C_in + C_hid, C_hid),
                                    jnp.float32)
    b_reset = 0.05 * jax.random.normal(kbr, (C_hid,), jnp.float32)
    b_out = 0.05 * jax.random.normal(kbo, (C_hid,), jnp.float32)

    out = conv_gru_cell_in(x, h, w_reset, b_reset, w_out, b_out, K=K)
    out = jax.block_until_ready(out)

    ref = conv_gru_cell_in_ref(x, h, w_reset, b_reset, w_out, b_out)
    assert out.shape == (B, H, W, C_hid)
    max_err = float(jnp.max(jnp.abs(out - ref)))
    assert jnp.allclose(out, ref, atol=3e-3, rtol=3e-3), max_err

    print("KERNEL_OK")
</pallas_src>

<mosaic_0001>
module attributes {stable_mosaic.version = 11 : i64} {
  func.func @_convgru_kernel(%arg0: i32, %arg1: memref<48x256xbf16, #tpu.memory_space<vmem>>, %arg2: memref<48x128xbf16, #tpu.memory_space<vmem>>, %arg3: memref<3x256x256xbf16, #tpu.memory_space<vmem>>, %arg4: memref<3x128x128xbf16, #tpu.memory_space<vmem>>, %arg5: memref<1x256xf32, #tpu.memory_space<vmem>>, %arg6: memref<48x128xf32, #tpu.memory_space<vmem>>) attributes {dimension_semantics = [#tpu.dimension_semantics<parallel>], iteration_bounds = array<i64: 2>, scalar_prefetch = 0 : i64, scratch_operands = 0 : i64, tpu.core_type = #tpu.core_type<tc>, window_params = [{transform_indices = @transform_0, window_bounds = array<i64: 48, 256>}, {transform_indices = @transform_1, window_bounds = array<i64: 48, 128>}, {pipeline_mode = #tpu.pipeline_mode<synchronous>, transform_indices = @transform_2, window_bounds = array<i64: 3, 256, 256>}, {pipeline_mode = #tpu.pipeline_mode<synchronous>, transform_indices = @transform_3, window_bounds = array<i64: 3, 128, 128>}, {pipeline_mode = #tpu.pipeline_mode<synchronous>, transform_indices = @transform_4, window_bounds = array<i64: 1, 256>}, {transform_indices = @transform_5, window_bounds = array<i64: 48, 128>}]} {
    %c0 = arith.constant 0 : index
    %c0_0 = arith.constant 0 : index
    %0 = vector.load %arg1[%c0, %c0_0] : memref<48x256xbf16, #tpu.memory_space<vmem>>, vector<48x256xbf16>
    %c0_1 = arith.constant 0 : index
    %c0_2 = arith.constant 0 : index
    %c0_3 = arith.constant 0 : index
    %1 = vector.load %arg3[%c0_1, %c0_2, %c0_3] : memref<3x256x256xbf16, #tpu.memory_space<vmem>>, vector<1x256x256xbf16>
    %2 = vector.shape_cast %1 : vector<1x256x256xbf16> to vector<256x256xbf16>
    %cst = arith.constant dense<0.000000e+00> : vector<48x256xf32>
    %3 = tpu.matmul %0, %2, %cst {dimension_numbers = #tpu.dot_dimension_numbers<[1], [0], [0], [1], [0, 0, 1, 1], [], []>} : vector<48x256xbf16>, vector<256x256xbf16>, vector<48x256xf32> -> vector<48x256xf32>
    %c1 = arith.constant 1 : index
    %c0_4 = arith.constant 0 : index
    %c0_5 = arith.constant 0 : index
    %4 = vector.load %arg3[%c1, %c0_4, %c0_5] : memref<3x256x256xbf16, #tpu.memory_space<vmem>>, vector<1x256x256xbf16>
    %5 = vector.shape_cast %4 : vector<1x256x256xbf16> to vector<256x256xbf16>
    %cst_6 = arith.constant dense<0.000000e+00> : vector<48x256xf32>
    %6 = tpu.matmul %0, %5, %cst_6 {dimension_numbers = #tpu.dot_dimension_numbers<[1], [0], [0], [1], [0, 0, 1, 1], [], []>} : vector<48x256xbf16>, vector<256x256xbf16>, vector<48x256xf32> -> vector<48x256xf32>
    %c47_i32 = arith.constant 47 : i32
    %7 = tpu.dynamic_rotate %6 by %c47_i32 dim 0 : vector<48x256xf32>, i32 -> vector<48x256xf32>
    %8 = arith.addf %3, %7 : vector<48x256xf32>
    %c2 = arith.constant 2 : index
    %c0_7 = arith.constant 0 : index
    %c0_8 = arith.constant 0 : index
    %9 = vector.load %arg3[%c2, %c0_7, %c0_8] : memref<3x256x256xbf16, #tpu.memory_space<vmem>>, vector<1x256x256xbf16>
    %10 = vector.shape_cast %9 : vector<1x256x256xbf16> to vector<256x256xbf16>
    %cst_9 = arith.constant dense<0.000000e+00> : vector<48x256xf32>
    %11 = tpu.matmul %0, %10, %cst_9 {dimension_numbers = #tpu.dot_dimension_numbers<[1], [0], [0], [1], [0, 0, 1, 1], [], []>} : vector<48x256xbf16>, vector<256x256xbf16>, vector<48x256xf32> -> vector<48x256xf32>
    %c46_i32 = arith.constant 46 : i32
    %12 = tpu.dynamic_rotate %11 by %c46_i32 dim 0 : vector<48x256xf32>, i32 -> vector<48x256xf32>
    %13 = arith.addf %8, %12 : vector<48x256xf32>
    %c0_10 = arith.constant 0 : index
    %c0_11 = arith.constant 0 : index
    %14 = vector.load %arg5[%c0_10, %c0_11] : memref<1x256xf32, #tpu.memory_space<vmem>>, vector<1x256xf32>
    %15 = vector.broadcast %14 : vector<1x256xf32> to vector<48x256xf32>
    %16 = arith.addf %13, %15 : vector<48x256xf32>
    %17 = vector.extract_strided_slice %16 {offsets = [0, 0], sizes = [48, 128], strides = [1, 1]} : vector<48x256xf32> to vector<48x128xf32>
    %18 = arith.negf %17 : vector<48x128xf32>
    %19 = math.exp %18 : vector<48x128xf32>
    %cst_12 = arith.constant 1.000000e+00 : f32
    %20 = vector.broadcast %cst_12 : f32 to vector<48x128xf32>
    %21 = arith.addf %20, %19 : vector<48x128xf32>
    %22 = arith.divf %20, %21 : vector<48x128xf32>
    %c0_13 = arith.constant 0 : index
    %c0_14 = arith.constant 0 : index
    %23 = vector.load %arg2[%c0_13, %c0_14] : memref<48x128xbf16, #tpu.memory_space<vmem>>, vector<48x128xbf16>
    %24 = arith.extf %23 : vector<48x128xbf16> to vector<48x128xf32>
    %25 = arith.mulf %24, %22 : vector<48x128xf32>
    %26 = arith.truncf %25 : vector<48x128xf32> to vector<48x128xbf16>
    %27 = vector.extract_strided_slice %16 {offsets = [0, 128], sizes = [48, 128], strides = [1, 1]} : vector<48x256xf32> to vector<48x128xf32>
    %c0_15 = arith.constant 0 : index
    %c0_16 = arith.constant 0 : index
    %c0_17 = arith.constant 0 : index
    %28 = vector.load %arg4[%c0_15, %c0_16, %c0_17] : memref<3x128x128xbf16, #tpu.memory_space<vmem>>, vector<1x128x128xbf16>
    %29 = vector.shape_cast %28 : vector<1x128x128xbf16> to vector<128x128xbf16>
    %cst_18 = arith.constant dense<0.000000e+00> : vector<48x128xf32>
    %30 = tpu.matmul %26, %29, %cst_18 {dimension_numbers = #tpu.dot_dimension_numbers<[1], [0], [0], [1], [0, 0, 1, 1], [], []>} : vector<48x128xbf16>, vector<128x128xbf16>, vector<48x128xf32> -> vector<48x128xf32>
    %c1_i32 = arith.constant 1 : i32
    %31 = tpu.dynamic_rotate %30 by %c1_i32 dim 0 : vector<48x128xf32>, i32 -> vector<48x128xf32>
    %32 = arith.addf %27, %31 : vector<48x128xf32>
    %c1_19 = arith.constant 1 : index
    %c0_20 = arith.constant 0 : index
    %c0_21 = arith.constant 0 : index
    %33 = vector.load %arg4[%c1_19, %c0_20, %c0_21] : memref<3x128x128xbf16, #tpu.memory_space<vmem>>, vector<1x128x128xbf16>
    %34 = vector.shape_cast %33 : vector<1x128x128xbf16> to vector<128x128xbf16>
    %cst_22 = arith.constant dense<0.000000e+00> : vector<48x128xf32>
    %35 = tpu.matmul %26, %34, %cst_22 {dimension_numbers = #tpu.dot_dimension_numbers<[1], [0], [0], [1], [0, 0, 1, 1], [], []>} : vector<48x128xbf16>, vector<128x128xbf16>, vector<48x128xf32> -> vector<48x128xf32>
    %36 = arith.addf %32, %35 : vector<48x128xf32>
    %c2_23 = arith.constant 2 : index
    %c0_24 = arith.constant 0 : index
    %c0_25 = arith.constant 0 : index
    %37 = vector.load %arg4[%c2_23, %c0_24, %c0_25] : memref<3x128x128xbf16, #tpu.memory_space<vmem>>, vector<1x128x128xbf16>
    %38 = vector.shape_cast %37 : vector<1x128x128xbf16> to vector<128x128xbf16>
    %cst_26 = arith.constant dense<0.000000e+00> : vector<48x128xf32>
    %39 = tpu.matmul %26, %38, %cst_26 {dimension_numbers = #tpu.dot_dimension_numbers<[1], [0], [0], [1], [0, 0, 1, 1], [], []>} : vector<48x128xbf16>, vector<128x128xbf16>, vector<48x128xf32> -> vector<48x128xf32>
    %c47_i32_27 = arith.constant 47 : i32
    %40 = tpu.dynamic_rotate %39 by %c47_i32_27 dim 0 : vector<48x128xf32>, i32 -> vector<48x128xf32>
    %41 = arith.addf %36, %40 : vector<48x128xf32>
    %42 = math.tanh %41 : vector<48x128xf32>
    %c0_28 = arith.constant 0 : index
    %c0_29 = arith.constant 0 : index
    %43 = vector.load %arg6[%c0_28, %c0_29] : memref<48x128xf32, #tpu.memory_space<vmem>>, vector<48x128xf32>
    tpu.vector_store %arg6[%c0_28, %c0_29], %42 {strides = array<i32>} : memref<48x128xf32, #tpu.memory_space<vmem>>, vector<48x128xf32>,
    return
  }
  func.func @transform_0(%arg0: i32) -> (i32, i32) {
    %c0_i32 = arith.constant 0 : i32
    %c0_i32_0 = arith.constant 0 : i32
    return %arg0, %c0_i32 : i32, i32
  }
  func.func @transform_1(%arg0: i32) -> (i32, i32) {
    %c0_i32 = arith.constant 0 : i32
    %c0_i32_0 = arith.constant 0 : i32
    return %arg0, %c0_i32 : i32, i32
  }
  func.func @transform_2(%arg0: i32) -> (i32, i32, i32) {
    %c0_i32 = arith.constant 0 : i32
    %c0_i32_0 = arith.constant 0 : i32
    %c0_i32_1 = arith.constant 0 : i32
    %c0_i32_2 = arith.constant 0 : i32
    return %c0_i32, %c0_i32_0, %c0_i32_1 : i32, i32, i32
  }
  func.func @transform_3(%arg0: i32) -> (i32, i32, i32) {
    %c0_i32 = arith.constant 0 : i32
    %c0_i32_0 = arith.constant 0 : i32
    %c0_i32_1 = arith.constant 0 : i32
    %c0_i32_2 = arith.constant 0 : i32
    return %c0_i32, %c0_i32_0, %c0_i32_1 : i32, i32, i32
  }
  func.func @transform_4(%arg0: i32) -> (i32, i32) {
    %c0_i32 = arith.constant 0 : i32
    %c0_i32_0 = arith.constant 0 : i32
    %c0_i32_1 = arith.constant 0 : i32
    return %c0_i32, %c0_i32_0 : i32, i32
  }
  func.func @transform_5(%arg0: i32) -> (i32, i32) {
    %c0_i32 = arith.constant 0 : i32
    %c0_i32_0 = arith.constant 0 : i32
    return %arg0, %c0_i32 : i32, i32
  }
}

</mosaic_0001>

<llo_original>
// kernel: tpu_custom_call.1
$region0: #{tpu_custom_call.1}
  #allocation0 [shape = 'u32[]', space=smem, size = 0x4, offset = 0x4, fixed_abs, tag = 'smem constant byte address 0x4 - core index']
  #allocation1 [shape = 'u32[144,128]{1,0:T(1,128)}', space=vmem, size = 0x12000, scoped, tag = 'internal scratch']
  %s0 = inlined_call_operand.hbm [shape: bf16[96,256], index: 0, kind: input, shape index: {}]
  %s1 = inlined_call_operand.hbm [shape: bf16[96,128], index: 1, kind: input, shape index: {}]
  %s2 = inlined_call_operand.hbm [shape: bf16[3,256,256], index: 2, kind: input, shape index: {}]
  %s3 = inlined_call_operand.hbm [shape: bf16[3,128,128], index: 3, kind: input, shape index: {}]
  %s4 = inlined_call_operand.vmem [shape: f32[1,256], index: 4, kind: input, shape index: {}]
  %s5 = inlined_call_operand.hbm [shape: f32[96,128], index: 5, kind: output, shape index: {}]
  %s6 = sld [smem:[#allocation0]]
  $region69: #{tpu_custom_call.1} parent=0
    _
  %s8 = ssub.s32 1, %s6
  %s9 = scalar_select 0, %s8, %s6
  $region1: #{tpu_custom_call.1} parent=0
    #allocation2 [shape = 'u8[49152]{0}', space=vmem, size = 0xc000, scoped, tag = 'input window, operand 0']
    #allocation3 [shape = 's32[2]{0}', space=sflag, size = 0x8, scoped, tag = 'scoped memory for tpu_custom_call.1']
    #allocation4 [shape = 's32[2]{0}', space=sflag, size = 0x8, scoped, tag = 'scoped memory for tpu_custom_call.1']
    #allocation5 [shape = 'u8[24576]{0}', space=vmem, size = 0x6000, scoped, tag = 'input window, operand 1']
    #allocation6 [shape = 's32[2]{0}', space=sflag, size = 0x8, scoped, tag = 'scoped memory for tpu_custom_call.1']
    #allocation7 [shape = 'u8[393216]{0}', space=vmem, size = 0x60000, scoped, tag = 'input window, operand 2, single buffered']
    #allocation8 [shape = 'u8[98304]{0}', space=vmem, size = 0x18000, scoped, tag = 'input window, operand 3, single buffered']
    #allocation9 [shape = 's32[1]{0}', space=sflag, size = 0x4, scoped, tag = 'scoped memory for tpu_custom_call.1']
    #allocation10 [shape = 'u8[49152]{0}', space=vmem, size = 0xc000, scoped, tag = 'output window, operand 0']
    %10 = vsyncpa [#allocation3], 0
    %s11 = scalar_lea.sflag [#allocation3], 1
    %12 = vsyncpa %s11, 0
    %13 = vsyncpa [#allocation6], 0
    %s14 = scalar_lea.sflag [#allocation6], 1
    %15 = vsyncpa %s14, 0
    %16 = vsyncpa [#allocation9], 0
    %17 = vsyncpa [#allocation4], 0
    %s18 = scalar_lea.sflag [#allocation4], 1
    %19 = vsyncpa %s18, 0
    loop: start=0, step=1, limit=4
    $region2: #{tpu_custom_call.1} parent=1 // loop_pre_header
      _
    $region3: #{tpu_custom_call.1} parent=1 // loop_header
      %s21 = sphi 0, %s25
      %p22 = scmp.ge.s32.totalorder %s21, 4
      %s31 = sphi 0, %s33
      %s34 = sphi 0, %s31
      %s35 = sphi 0, %s34
      %s51 = sphi 0, %s35
      %s57 = sphi 0, %s59
      %s60 = sphi 0, %s57
      %s61 = sphi 0, %s60
      %s77 = sphi 0, %s61
      %s81 = sphi 0, %s81
      %s83 = sphi 0, %s81
      %s84 = sphi 0, %s83
      %s98 = sphi 0, %s84
      %s102 = sphi 0, %s102
      %s104 = sphi 0, %s102
      %s105 = sphi 0, %s104
      %s119 = sphi 0, %s105
      %s123 = sphi 0, %s123
      %s125 = sphi 0, %s123
      %s126 = sphi 0, %s125
      %s140 = sphi 0, %s126
      %s146 = sphi 0, %s148
      %s149 = sphi 0, %s146
      %s150 = sphi 0, %s149
      %s166 = sphi 0, %s150
    $region4: #{tpu_custom_call.1} parent=1 // loop_header_branch
      %24 = sbr.rel (%p22) target = $region8
    $region5: #{tpu_custom_call.1} parent=1 // loop_body
      %s26 = ssub.s32 %s21, 1
      %s27 = ssub.s32 %s21, 2
      %s28 = sadd.s32 %s21, 1
      %s29 = ssub.s32 %s21, %s28
      %p30 = scmp.eq.s32.totalorder %s29, 0
      %s32 = sadd.s32 %s31, 1
      %s33 = scalar_select %p30, %s31, %s32
      %p36 = pneg %p30
      %p37 = scmp.eq.s32.totalorder %s21, 1
      %p38 = por %p36, %p37
      %p39 = scmp.ne.s32.totalorder %s31, %s34
      %p40 = scmp.eq.s32.totalorder %s21, 0
      %p41 = por %p39, %p40
      %p42 = scmp.ne.s32.totalorder %s31, %s34
      %p43 = scmp.eq.s32.totalorder %s26, 1
      %p44 = por %p42, %p43
      %p45 = scmp.ne.s32.totalorder %s34, %s35
      %p46 = scmp.eq.s32.totalorder %s26, 0
      %p47 = por %p45, %p46
      %p48 = scmp.ne.s32.totalorder %s34, %s35
      %p49 = scmp.eq.s32.totalorder %s27, 1
      %p50 = por %p48, %p49
      %p52 = scmp.ne.s32.totalorder %s35, %s51
      %p53 = scmp.eq.s32.totalorder %s27, 0
      %p54 = por %p52, %p53
      %s55 = ssub.s32 %s21, %s28
      %p56 = scmp.eq.s32.totalorder %s55, 0
      %s58 = sadd.s32 %s57, 1
      %s59 = scalar_select %p56, %s57, %s58
      %p62 = pneg %p56
      %p63 = scmp.eq.s32.totalorder %s21, 1
      %p64 = por %p62, %p63
      %p65 = scmp.ne.s32.totalorder %s57, %s60
      %p66 = scmp.eq.s32.totalorder %s21, 0
      %p67 = por %p65, %p66
      %p68 = scmp.ne.s32.totalorder %s57, %s60
      %p69 = scmp.eq.s32.totalorder %s26, 1
      %p70 = por %p68, %p69
      %p71 = scmp.ne.s32.totalorder %s60, %s61
      %p72 = scmp.eq.s32.totalorder %s26, 0
      %p73 = por %p71, %p72
      %p74 = scmp.ne.s32.totalorder %s60, %s61
      %p75 = scmp.eq.s32.totalorder %s27, 1
      %p76 = por %p74, %p75
      %p78 = scmp.ne.s32.totalorder %s61, %s77
      %p79 = scmp.eq.s32.totalorder %s27, 0
      %p80 = por %p78, %p79
      %s82 = sadd.s32 %s81, 1
      %p85 = scmp.eq.s32.totalorder %s21, 1
      %p86 = scmp.ne.s32.totalorder %s81, %s83
      %p87 = scmp.eq.s32.totalorder %s21, 0
      %p88 = por %p86, %p87
      %p89 = scmp.ne.s32.totalorder %s81, %s83
      %p90 = scmp.eq.s32.totalorder %s26, 1
      %p91 = por %p89, %p90
      %p92 = scmp.ne.s32.totalorder %s83, %s84
      %p93 = scmp.eq.s32.totalorder %s26, 0
      %p94 = por %p92, %p93
      %p95 = scmp.ne.s32.totalorder %s83, %s84
      %p96 = scmp.eq.s32.totalorder %s27, 1
      %p97 = por %p95, %p96
      %p99 = scmp.ne.s32.totalorder %s84, %s98
      %p100 = scmp.eq.s32.totalorder %s27, 0
      %p101 = por %p99, %p100
      %s103 = sadd.s32 %s102, 1
      %p106 = scmp.eq.s32.totalorder %s21, 1
      %p107 = scmp.ne.s32.totalorder %s102, %s104
      %p108 = scmp.eq.s32.totalorder %s21, 0
      %p109 = por %p107, %p108
      %p110 = scmp.ne.s32.totalorder %s102, %s104
      %p111 = scmp.eq.s32.totalorder %s26, 1
      %p112 = por %p110, %p111
      %p113 = scmp.ne.s32.totalorder %s104, %s105
      %p114 = scmp.eq.s32.totalorder %s26, 0
      %p115 = por %p113, %p114
      %p116 = scmp.ne.s32.totalorder %s104, %s105
      %p117 = scmp.eq.s32.totalorder %s27, 1
      %p118 = por %p116, %p117
      %p120 = scmp.ne.s32.totalorder %s105, %s119
      %p121 = scmp.eq.s32.totalorder %s27, 0
      %p122 = por %p120, %p121
      %s124 = sadd.s32 %s123, 1
      %p127 = scmp.eq.s32.totalorder %s21, 1
      %p128 = scmp.ne.s32.totalorder %s123, %s125
      %p129 = scmp.eq.s32.totalorder %s21, 0
      %p130 = por %p128, %p129
      %p131 = scmp.ne.s32.totalorder %s123, %s125
      %p132 = scmp.eq.s32.totalorder %s26, 1
      %p133 = por %p131, %p132
      %p134 = scmp.ne.s32.totalorder %s125, %s126
      %p135 = scmp.eq.s32.totalorder %s26, 0
      %p136 = por %p134, %p135
      %p137 = scmp.ne.s32.totalorder %s125, %s126
      %p138 = scmp.eq.s32.totalorder %s27, 1
      %p139 = por %p137, %p138
      %p141 = scmp.ne.s32.totalorder %s126, %s140
      %p142 = scmp.eq.s32.totalorder %s27, 0
      %p143 = por %p141, %p142
      %s144 = ssub.s32 %s21, %s28
      %p145 = scmp.eq.s32.totalorder %s144, 0
      %s147 = sadd.s32 %s146, 1
      %s148 = scalar_select %p145, %s146, %s147
      %p151 = pneg %p145
      %p152 = scmp.eq.s32.totalorder %s21, 1
      %p153 = por %p151, %p152
      %p154 = scmp.ne.s32.totalorder %s146, %s149
      %p155 = scmp.eq.s32.totalorder %s21, 0
      %p156 = por %p154, %p155
      %p157 = scmp.ne.s32.totalorder %s146, %s149
      %p158 = scmp.eq.s32.totalorder %s26, 1
      %p159 = por %p157, %p158
      %p160 = scmp.ne.s32.totalorder %s149, %s150
      %p161 = scmp.eq.s32.totalorder %s26, 0
      %p162 = por %p160, %p161
      %p163 = scmp.ne.s32.totalorder %s149, %s150
      %p164 = scmp.eq.s32.totalorder %s27, 1
      %p165 = por %p163, %p164
      %p167 = scmp.ne.s32.totalorder %s150, %s166
      %p168 = scmp.eq.s32.totalorder %s27, 0
      %p169 = por %p167, %p168
      %p170 = scmp.le.s32.totalorder 1, %s21
      %p171 = scmp.lt.s32.totalorder %s21, 3
      %p172 = pnand %p170, %p171
      %p173 = pneg %p172
      // Predicated region
      $region9: #{tpu_custom_call.1} parent=5 // pred_check
        _
      $region10: #{tpu_custom_call.1} parent=5 // pred_check_branch
        %175 = sbr.rel (%p172) target = $region12
      $region11: #{tpu_custom_call.1} parent=5 // pred_region
        %s176 = ssub.s32 %s21, 1
        // Predicated region
        $region13: #{tpu_custom_call.1} parent=11 // pred_check
          %p177 = pneg %p94
        $region14: #{tpu_custom_call.1} parent=11 // pred_check_branch
          %179 = sbr.rel (%p177) target = $region16
        $region15: #{tpu_custom_call.1} parent=11 // pred_region
          %s181 = ssub.s32 12288, 12288
          %182 = vsyncadd [#allocation6], %s181
          %s183 = sshll.u32 [#allocation7], 4
          %s184 = int_to_ptr.vmem [resolvable:$true] %s183
          %189 = dma.hbm_to_vmem [thread:$0]  %s2, 12288, %s184, [#allocation6], 128, 128, 8
        $region16: #{tpu_custom_call.1} parent=11 // pred_fallthru
          _
        // Predicated region
        $region17: #{tpu_custom_call.1} parent=11 // pred_check
          %p190 = pneg %p115
        $region18: #{tpu_custom_call.1} parent=11 // pred_check_branch
          %192 = sbr.rel (%p190) target = $region20
        $region19: #{tpu_custom_call.1} parent=11 // pred_region
          %s194 = ssub.s32 3072, 3072
          %195 = vsyncadd [#allocation9], %s194
          %s196 = sshll.u32 [#allocation8], 4
          %s197 = int_to_ptr.vmem [resolvable:$true] %s196
          %202 = dma.hbm_to_vmem [thread:$0]  %s3, 3072, %s197, [#allocation9], 64, 64, 4
        $region20: #{tpu_custom_call.1} parent=11 // pred_fallthru
          _
        // Predicated region
        $region21: #{tpu_custom_call.1} parent=11 // pred_check
          %p203 = pneg %p136
        $region22: #{tpu_custom_call.1} parent=11 // pred_check_branch
          %205 = sbr.rel (%p203) target = $region24
        $region23: #{tpu_custom_call.1} parent=11 // pred_region
          _
        $region24: #{tpu_custom_call.1} parent=11 // pred_fallthru
          _
      $region12: #{tpu_custom_call.1} parent=5 // pred_fallthru
        _
      %p206 = scmp.lt.s32.totalorder %s21, 2
      // Predicated region
      $region25: #{tpu_custom_call.1} parent=5 // pred_check
        %p207 = pneg %p206
      $region26: #{tpu_custom_call.1} parent=5 // pred_check_branch
        %209 = sbr.rel (%p207) target = $region28
      $region27: #{tpu_custom_call.1} parent=5 // pred_region
        // Predicated region
        $region29: #{tpu_custom_call.1} parent=27 // pred_check
          %p210 = pneg %p41
        $region30: #{tpu_custom_call.1} parent=27 // pred_check_branch
          %212 = sbr.rel (%p210) target = $region32
        $region31: #{tpu_custom_call.1} parent=27 // pred_region
          %s213 = sand.u32 %s31, 1
          %s214 = scalar_lea.sflag [#allocation3], %s213
          %s215 = sand.u32 %s31, 1
          %s216 = smul.addr %s215, 48
          %s217 = scalar_lea.vmem [#allocation2], %s216
          %s218 = smul.u32 6, %s21
          %s220 = ssub.s32 768, 768
          %221 = vsyncadd %s214, %s220
          %s222 = smul.addr %s218, 2
          %s223 = smul.addr %s222, 64
          %s224 = scalar_lea.hbm %s0, %s223
          %s225 = sshll.u32 %s217, 4
          %s226 = int_to_ptr.vmem [resolvable:$true] %s225
          %231 = dma.hbm_to_vmem [thread:$0]  %s224, 768, %s226, %s214, 128, 128, 8
        $region32: #{tpu_custom_call.1} parent=27 // pred_fallthru
          _
        // Predicated region
        $region33: #{tpu_custom_call.1} parent=27 // pred_check
          %p232 = pneg %p67
        $region34: #{tpu_custom_call.1} parent=27 // pred_check_branch
          %234 = sbr.rel (%p232) target = $region36
        $region35: #{tpu_custom_call.1} parent=27 // pred_region
          %s235 = sand.u32 %s21, 1
          %s236 = scalar_lea.sflag [#allocation6], %s235
          %s237 = sand.u32 %s57, 1
          %s238 = smul.addr %s237, 24
          %s239 = scalar_lea.vmem [#allocation5], %s238
          %s240 = smul.u32 6, %s21
          %s242 = ssub.s32 384, 384
          %243 = vsyncadd %s236, %s242
          %s244 = smul.addr %s240, 64
          %s245 = scalar_lea.hbm %s1, %s244
          %s246 = sshll.u32 %s239, 4
          %s247 = int_to_ptr.vmem [resolvable:$true] %s246
          %252 = dma.hbm_to_vmem [thread:$0]  %s245, 384, %s247, %s236, 64, 64, 4
        $region36: #{tpu_custom_call.1} parent=27 // pred_fallthru
          _
      $region28: #{tpu_custom_call.1} parent=5 // pred_fallthru
        _
      %p253 = scmp.le.s32.totalorder 1, %s21
      %p254 = scmp.lt.s32.totalorder %s21, 3
      %p255 = pnand %p253, %p254
      %p256 = pneg %p255
      // Predicated region
      $region37: #{tpu_custom_call.1} parent=5 // pred_check
        _
      $region38: #{tpu_custom_call.1} parent=5 // pred_check_branch
        %258 = sbr.rel (%p255) target = $region40
      $region39: #{tpu_custom_call.1} parent=5 // pred_region
        %s259 = ssub.s32 %s21, 1
        %s260 = sand.u32 %s34, 1
        %s261 = scalar_lea.sflag [#allocation3], %s260
        %s262 = sand.u32 %s34, 1
        %s263 = smul.addr %s262, 48
        %s264 = scalar_lea.vmem [#allocation2], %s263
        // Predicated region
        $region41: #{tpu_custom_call.1} parent=39 // pred_check
          %p265 = pneg %p47
        $region42: #{tpu_custom_call.1} parent=39 // pred_check_branch
          %267 = sbr.rel (%p265) target = $region44
        $region43: #{tpu_custom_call.1} parent=39 // pred_region
          %268 = dma.done %s261, 768
        $region44: #{tpu_custom_call.1} parent=39 // pred_fallthru
          _
        %s269 = sand.u32 %s26, 1
        %s270 = scalar_lea.sflag [#allocation6], %s269
        %s271 = sand.u32 %s60, 1
        %s272 = smul.addr %s271, 24
        %s273 = scalar_lea.vmem [#allocation5], %s272
        // Predicated region
        $region45: #{tpu_custom_call.1} parent=39 // pred_check
          %p274 = pneg %p73
        $region46: #{tpu_custom_call.1} parent=39 // pred_check_branch
          %276 = sbr.rel (%p274) target = $region48
        $region47: #{tpu_custom_call.1} parent=39 // pred_region
          %277 = dma.done %s270, 384
        $region48: #{tpu_custom_call.1} parent=39 // pred_fallthru
          _
        // Predicated region
        $region49: #{tpu_custom_call.1} parent=39 // pred_check
          %p278 = pneg %p94
        $region50: #{tpu_custom_call.1} parent=39 // pred_check_branch
          %280 = sbr.rel (%p278) target = $region52
        $region51: #{tpu_custom_call.1} parent=39 // pred_region
          %281 = dma.done [#allocation6], 12288
        $region52: #{tpu_custom_call.1} parent=39 // pred_fallthru
          _
        // Predicated region
        $region53: #{tpu_custom_call.1} parent=39 // pred_check
          %p282 = pneg %p115
        $region54: #{tpu_custom_call.1} parent=39 // pred_check_branch
          %284 = sbr.rel (%p282) target = $region56
        $region55: #{tpu_custom_call.1} parent=39 // pred_region
          %285 = dma.done [#allocation9], 3072
        $region56: #{tpu_custom_call.1} parent=39 // pred_fallthru
          _
        %s286 = sand.u32 %s34, 1
        %s287 = scalar_lea.sflag [#allocation3], %s286
        %s288 = sand.u32 %s34, 1
        %s289 = smul.addr %s288, 48
        %s290 = scalar_lea.vmem [#allocation2], %s289
        %p291 = pneg %p47
        %p292 = pneg %p44
        %s293 = sand.u32 %s26, 1
        %s294 = scalar_lea.sflag [#allocation6], %s293
        %s295 = sand.u32 %s60, 1
        %s296 = smul.addr %s295, 24
        %s297 = scalar_lea.vmem [#allocation5], %s296
        %p298 = pneg %p73
        %p299 = pneg %p70
        %p300 = pneg %p94
        %p301 = pneg %p91
        %p302 = pneg %p115
        %p303 = pneg %p112
        %p304 = pneg %p136
        %p305 = pneg %p133
        %p306 = pneg %p162
        %p307 = pneg %p159
        %s308 = sand.u32 %s149, 1
        %s309 = scalar_lea.sflag [#allocation4], %s308
        %s310 = sand.u32 %s149, 1
        %s311 = smul.addr %s310, 48
        %s312 = scalar_lea.vmem [#allocation10], %s311
        %s313 = smul.u32 6, %s26
        %s314 = smul.u32 6, %s26
        %s315 = smul.u32 6, %s26
        %v317 = vld [vmem:[%s264] sm:$0xff]
        %v318 = vld [vmem:[%s264 + $0x8] sm:$0xff]
        %v319 = vld [vmem:[%s264 + $0x10] sm:$0xff]
        %v320 = vld [vmem:[%s264 + $0x18] sm:$0xff]
        %v321 = vld [vmem:[%s264 + $0x20] sm:$0xff]
        %v322 = vld [vmem:[%s264 + $0x28] sm:$0xff]
        %v323 = vld [vmem:[#allocation7] sm:$0xff]
        %v324 = vld [vmem:[#allocation7 + $0x8] sm:$0xff]
        %v325 = vld [vmem:[#allocation7 + $0x10] sm:$0xff]
        %v326 = vld [vmem:[#allocation7 + $0x18] sm:$0xff]
        %v327 = vld [vmem:[#allocation7 + $0x20] sm:$0xff]
        %v328 = vld [vmem:[#allocation7 + $0x28] sm:$0xff]
        %v329 = vld [vmem:[#allocation7 + $0x30] sm:$0xff]
        %v330 = vld [vmem:[#allocation7 + $0x38] sm:$0xff]
        %v331 = vld [vmem:[#allocation7 + $0x40] sm:$0xff]
        %v332 = vld [vmem:[#allocation7 + $0x48] sm:$0xff]
        %v333 = vld [vmem:[#allocation7 + $0x50] sm:$0xff]
        %v334 = vld [vmem:[#allocation7 + $0x58] sm:$0xff]
        %v335 = vld [vmem:[#allocation7 + $0x60] sm:$0xff]
        %v336 = vld [vmem:[#allocation7 + $0x68] sm:$0xff]
        %v337 = vld [vmem:[#allocation7 + $0x70] sm:$0xff]
        %v338 = vld [vmem:[#allocation7 + $0x78] sm:$0xff]
        %v339 = vld [vmem:[#allocation7 + $0x80] sm:$0xff]
        %v340 = vld [vmem:[#allocation7 + $0x88] sm:$0xff]
        %v341 = vld [vmem:[#allocation7 + $0x90] sm:$0xff]
        %v342 = vld [vmem:[#allocation7 + $0x98] sm:$0xff]
        %v343 = vld [vmem:[#allocation7 + $0xa0] sm:$0xff]
        %v344 = vld [vmem:[#allocation7 + $0xa8] sm:$0xff]
        %v345 = vld [vmem:[#allocation7 + $0xb0] sm:$0xff]
        %v346 = vld [vmem:[#allocation7 + $0xb8] sm:$0xff]
        %v347 = vld [vmem:[#allocation7 + $0xc0] sm:$0xff]
        %v348 = vld [vmem:[#allocation7 + $0xc8] sm:$0xff]
        %v349 = vld [vmem:[#allocation7 + $0xd0] sm:$0xff]
        %v350 = vld [vmem:[#allocation7 + $0xd8] sm:$0xff]
        %v351 = vld [vmem:[#allocation7 + $0xe0] sm:$0xff]
        %v352 = vld [vmem:[#allocation7 + $0xe8] sm:$0xff]
        %v353 = vld [vmem:[#allocation7 + $0xf0] sm:$0xff]
        %v354 = vld [vmem:[#allocation7 + $0xf8] sm:$0xff]
        %s355 = scalar_lea.vmem [#allocation7], 256
        %v356 = vld [vmem:[%s355] sm:$0xff]
        %v357 = vld [vmem:[%s355 + $0x8] sm:$0xff]
        %v358 = vld [vmem:[%s355 + $0x10] sm:$0xff]
        %v359 = vld [vmem:[%s355 + $0x18] sm:$0xff]
        %v360 = vld [vmem:[%s355 + $0x20] sm:$0xff]
        %v361 = vld [vmem:[%s355 + $0x28] sm:$0xff]
        %v362 = vld [vmem:[%s355 + $0x30] sm:$0xff]
        %v363 = vld [vmem:[%s355 + $0x38] sm:$0xff]
        %v364 = vld [vmem:[%s355 + $0x40] sm:$0xff]
        %v365 = vld [vmem:[%s355 + $0x48] sm:$0xff]
        %v366 = vld [vmem:[%s355 + $0x50] sm:$0xff]
        %v367 = vld [vmem:[%s355 + $0x58] sm:$0xff]
        %v368 = vld [vmem:[%s355 + $0x60] sm:$0xff]
        %v369 = vld [vmem:[%s355 + $0x68] sm:$0xff]
        %v370 = vld [vmem:[%s355 + $0x70] sm:$0xff]
        %v371 = vld [vmem:[%s355 + $0x78] sm:$0xff]
        %v372 = vld [vmem:[%s355 + $0x80] sm:$0xff]
        %v373 = vld [vmem:[%s355 + $0x88] sm:$0xff]
        %v374 = vld [vmem:[%s355 + $0x90] sm:$0xff]
        %v375 = vld [vmem:[%s355 + $0x98] sm:$0xff]
        %v376 = vld [vmem:[%s355 + $0xa0] sm:$0xff]
        %v377 = vld [vmem:[%s355 + $0xa8] sm:$0xff]
        %v378 = vld [vmem:[%s355 + $0xb0] sm:$0xff]
        %v379 = vld [vmem:[%s355 + $0xb8] sm:$0xff]
        %v380 = vld [vmem:[%s355 + $0xc0] sm:$0xff]
        %v381 = vld [vmem:[%s355 + $0xc8] sm:$0xff]
        %v382 = vld [vmem:[%s355 + $0xd0] sm:$0xff]
        %v383 = vld [vmem:[%s355 + $0xd8] sm:$0xff]
        %v384 = vld [vmem:[%s355 + $0xe0] sm:$0xff]
        %v385 = vld [vmem:[%s355 + $0xe8] sm:$0xff]
        %v386 = vld [vmem:[%s355 + $0xf0] sm:$0xff]
        %v387 = vld [vmem:[%s355 + $0xf8] sm:$0xff]
        %v394 = vunpack.c.l.b16 %v317
        %v395 = vunpack.c.h.b16 %v317
        %v396 = vunpack.c.l.b16 %v318
        %v397 = vunpack.c.h.b16 %v318
        %v398 = vunpack.c.l.b16 %v319
        %v399 = vunpack.c.h.b16 %v319
        %v400 = vunpack.c.l.b16 %v320
        %v401 = vunpack.c.h.b16 %v320
        %v402 = vunpack.c.l.b16 %v321
        %v403 = vunpack.c.h.b16 %v321
        %v404 = vunpack.c.l.b16 %v322
        %v405 = vunpack.c.h.b16 %v322
        %v406 = vpack.c.b16 %v396, %v394
        %v407 = vpack.c.b16 %v397, %v395
        %v408 = vpack.c.b16 %v400, %v398
        %v409 = vpack.c.b16 %v401, %v399
        %v410 = vpack.c.b16 %v404, %v402
        %v411 = vpack.c.b16 %v405, %v403
        %v450 = vunpack.c.l.b16 %v356
        %v451 = vunpack.c.h.b16 %v356
        %v452 = vunpack.c.l.b16 %v357
        %v453 = vunpack.c.h.b16 %v357
        %v454 = vunpack.c.l.b16 %v358
        %v455 = vunpack.c.h.b16 %v358
        %v456 = vunpack.c.l.b16 %v359
        %v457 = vunpack.c.h.b16 %v359
        %v458 = vunpack.c.l.b16 %v360
        %v459 = vunpack.c.h.b16 %v360
        %v460 = vunpack.c.l.b16 %v361
        %v461 = vunpack.c.h.b16 %v361
        %v462 = vunpack.c.l.b16 %v362
        %v463 = vunpack.c.h.b16 %v362
        %v464 = vunpack.c.l.b16 %v363
        %v465 = vunpack.c.h.b16 %v363
        %v466 = vunpack.c.l.b16 %v364
        %v467 = vunpack.c.h.b16 %v364
        %v468 = vunpack.c.l.b16 %v365
        %v469 = vunpack.c.h.b16 %v365
        %v470 = vunpack.c.l.b16 %v366
        %v471 = vunpack.c.h.b16 %v366
        %v472 = vunpack.c.l.b16 %v367
        %v473 = vunpack.c.h.b16 %v367
        %v474 = vunpack.c.l.b16 %v368
        %v475 = vunpack.c.h.b16 %v368
        %v476 = vunpack.c.l.b16 %v369
        %v477 = vunpack.c.h.b16 %v369
        %v478 = vunpack.c.l.b16 %v370
        %v479 = vunpack.c.h.b16 %v370
        %v480 = vunpack.c.l.b16 %v371
        %v481 = vunpack.c.h.b16 %v371
        %v482 = vunpack.c.l.b16 %v372
        %v483 = vunpack.c.h.b16 %v372
        %v484 = vunpack.c.l.b16 %v373
        %v485 = vunpack.c.h.b16 %v373
        %v486 = vunpack.c.l.b16 %v374
        %v487 = vunpack.c.h.b16 %v374
        %v488 = vunpack.c.l.b16 %v375
        %v489 = vunpack.c.h.b16 %v375
        %v490 = vunpack.c.l.b16 %v376
        %v491 = vunpack.c.h.b16 %v376
        %v492 = vunpack.c.l.b16 %v377
        %v493 = vunpack.c.h.b16 %v377
        %v494 = vunpack.c.l.b16 %v378
        %v495 = vunpack.c.h.b16 %v378
        %v496 = vunpack.c.l.b16 %v379
        %v497 = vunpack.c.h.b16 %v379
        %v498 = vunpack.c.l.b16 %v380
        %v499 = vunpack.c.h.b16 %v380
        %v500 = vunpack.c.l.b16 %v381
        %v501 = vunpack.c.h.b16 %v381
        %v502 = vunpack.c.l.b16 %v382
        %v503 = vunpack.c.h.b16 %v382
        %v504 = vunpack.c.l.b16 %v383
        %v505 = vunpack.c.h.b16 %v383
        %v506 = vunpack.c.l.b16 %v384
        %v507 = vunpack.c.h.b16 %v384
        %v508 = vunpack.c.l.b16 %v385
        %v509 = vunpack.c.h.b16 %v385
        %v510 = vunpack.c.l.b16 %v386
        %v511 = vunpack.c.h.b16 %v386
        %v512 = vunpack.c.l.b16 %v387
        %v513 = vunpack.c.h.b16 %v387
        %v514 = vpack.c.b16 %v452, %v450
        %v515 = vpack.c.b16 %v453, %v451
        %v516 = vpack.c.b16 %v456, %v454
        %v517 = vpack.c.b16 %v457, %v455
        %v518 = vpack.c.b16 %v460, %v458
        %v519 = vpack.c.b16 %v461, %v459
        %v520 = vpack.c.b16 %v464, %v462
        %v521 = vpack.c.b16 %v465, %v463
        %v522 = vpack.c.b16 %v468, %v466
        %v523 = vpack.c.b16 %v469, %v467
        %v524 = vpack.c.b16 %v472, %v470
        %v525 = vpack.c.b16 %v473, %v471
        %v526 = vpack.c.b16 %v476, %v474
        %v527 = vpack.c.b16 %v477, %v475
        %v528 = vpack.c.b16 %v480, %v478
        %v529 = vpack.c.b16 %v481, %v479
        %v530 = vpack.c.b16 %v484, %v482
        %v531 = vpack.c.b16 %v485, %v483
        %v532 = vpack.c.b16 %v488, %v486
        %v533 = vpack.c.b16 %v489, %v487
        %v534 = vpack.c.b16 %v492, %v490
        %v535 = vpack.c.b16 %v493, %v491
        %v536 = vpack.c.b16 %v496, %v494
        %v537 = vpack.c.b16 %v497, %v495
        %v538 = vpack.c.b16 %v500, %v498
        %v539 = vpack.c.b16 %v501, %v499
        %v540 = vpack.c.b16 %v504, %v502
        %v541 = vpack.c.b16 %v505, %v503
        %v542 = vpack.c.b16 %v508, %v506
        %v543 = vpack.c.b16 %v509, %v507
        %v544 = vpack.c.b16 %v512, %v510
        %v545 = vpack.c.b16 %v513, %v511
        %578 = vmatprep.subr.bf16.mxu0 %v515
        %579 = vmatpush1.bf16.msra.mxu0 %v514
        %580 = vmatprep.subr.bf16.mxu0 %v517
        %581 = vmatpush1.bf16.msra.mxu0 %v516
        %582 = vmatprep.subr.bf16.mxu0 %v519
        %583 = vmatpush1.bf16.msra.mxu0 %v518
        %584 = vmatprep.subr.bf16.mxu0 %v521
        %585 = vmatpush1.bf16.msra.mxu0 %v520
        %586 = vmatprep.subr.bf16.mxu0 %v523
        %587 = vmatpush1.bf16.msra.mxu0 %v522
        %588 = vmatprep.subr.bf16.mxu0 %v525
        %589 = vmatpush1.bf16.msra.mxu0 %v524
        %590 = vmatprep.subr.bf16.mxu0 %v527
        %591 = vmatpush1.bf16.msra.mxu0 %v526
        %592 = vmatprep.subr.bf16.mxu0 %v529
        %593 = vmatpush1.bf16.msra.mxu0 %v528
        %594 = vmatprep.subr.bf16.mxu0 %v531
        %595 = vmatpush1.bf16.msra.mxu0 %v530
        %596 = vmatprep.subr.bf16.mxu0 %v533
        %597 = vmatpush1.bf16.msra.mxu0 %v532
        %598 = vmatprep.subr.bf16.mxu0 %v535
        %599 = vmatpush1.bf16.msra.mxu0 %v534
        %600 = vmatprep.subr.bf16.mxu0 %v537
        %601 = vmatpush1.bf16.msra.mxu0 %v536
        %602 = vmatprep.subr.bf16.mxu0 %v539
        %603 = vmatpush1.bf16.msra.mxu0 %v538
        %604 = vmatprep.subr.bf16.mxu0 %v541
        %605 = vmatpush1.bf16.msra.mxu0 %v540
        %606 = vmatprep.subr.bf16.mxu0 %v543
        %607 = vmatpush1.bf16.msra.mxu0 %v542
        %608 = vmatprep.subr.bf16.mxu0 %v545
        %609 = vmatpush1.bf16.msra.mxu0 %v544
        %610 = vmatprep.mubr.bf16.mxu0 %v407
        %611 = vmatmul.mubr.bf16.gmra.mrb[0].mxu0 %v406
        %v612 = vpop.f32.mrb[0].mxu0
        %v613 = vadd.f32 0.0, %v612
        %v614 = vpop.f32.mrb[0].mxu0
        %v615 = vadd.f32 0.0, %v614
        %v616 = vpop.f32.mrb[0].mxu0
        %v617 = vadd.f32 0.0, %v616
        %v618 = vpop.f32.mrb[0].mxu0
        %v619 = vadd.f32 0.0, %v618
        %620 = vmatprep.mubr.bf16.mxu0 %v409
        %621 = vmatmul.mubr.bf16.gmra.mrb[0].mxu0 %v408
        %v622 = vpop.f32.mrb[0].mxu0
        %v623 = vadd.f32 0.0, %v622
        %v624 = vpop.f32.mrb[0].mxu0
        %v625 = vadd.f32 0.0, %v624
        %v626 = vpop.f32.mrb[0].mxu0
        %v627 = vadd.f32 0.0, %v626
        %v628 = vpop.f32.mrb[0].mxu0
        %v629 = vadd.f32 0.0, %v628
        %630 = vmatprep.mubr.bf16.mxu0 %v411
        %631 = vmatmul.mubr.bf16.gmra.mrb[0].mxu0 %v410
        %v632 = vpop.f32.mrb[0].mxu0
        %v633 = vadd.f32 0.0, %v632
        %v634 = vpop.f32.mrb[0].mxu0
        %v635 = vadd.f32 0.0, %v634
        %v636 = vpop.f32.mrb[0].mxu0
        %v637 = vadd.f32 0.0, %v636
        %v638 = vpop.f32.mrb[0].mxu0
        %v639 = vadd.f32 0.0, %v638
        %640 = vdwg.mxu0
        %v641 = vrot.slane %v613, 1
        %v642 = vrot.slane %v615, 1
        %v643 = vrot.slane %v617, 1
        %v644 = vrot.slane %v619, 1
        %v645 = vrot.slane %v623, 1
        %v646 = vrot.slane %v625, 1
        %v647 = vrot.slane %v627, 1
        %v648 = vrot.slane %v629, 1
        %v649 = vrot.slane %v633, 1
        %v650 = vrot.slane %v635, 1
        %v651 = vrot.slane %v637, 1
        %v652 = vrot.slane %v639, 1
        %v653 = vlaneseq
        %v654 = vshrl.u32 %v653, 7
        %vm655 = vcmp.lt.s32.totalorder %v654, 7
        %v656 = vsel %vm655, %v649, %v651
        %v657 = vsel %vm655, %v650, %v652
        %v658 = vsel %vm655, %v647, %v649
        %v659 = vsel %vm655, %v648, %v650
        %v660 = vsel %vm655, %v645, %v647
        %v661 = vsel %vm655, %v646, %v648
        %v662 = vsel %vm655, %v643, %v645
        %v663 = vsel %vm655, %v644, %v646
        %v664 = vsel %vm655, %v641, %v643
        %v665 = vsel %vm655, %v642, %v644
        %v666 = vsel %vm655, %v651, %v641
        %v667 = vsel %vm655, %v652, %v642
        %v700 = vunpack.c.l.b16 %v323
        %v701 = vunpack.c.h.b16 %v323
        %v702 = vunpack.c.l.b16 %v324
        %v703 = vunpack.c.h.b16 %v324
        %v704 = vunpack.c.l.b16 %v325
        %v705 = vunpack.c.h.b16 %v325
        %v706 = vunpack.c.l.b16 %v326
        %v707 = vunpack.c.h.b16 %v326
        %v708 = vunpack.c.l.b16 %v327
        %v709 = vunpack.c.h.b16 %v327
        %v710 = vunpack.c.l.b16 %v328
        %v711 = vunpack.c.h.b16 %v328
        %v712 = vunpack.c.l.b16 %v329
        %v713 = vunpack.c.h.b16 %v329
        %v714 = vunpack.c.l.b16 %v330
        %v715 = vunpack.c.h.b16 %v330
        %v716 = vunpack.c.l.b16 %v331
        %v717 = vunpack.c.h.b16 %v331
        %v718 = vunpack.c.l.b16 %v332
        %v719 = vunpack.c.h.b16 %v332
        %v720 = vunpack.c.l.b16 %v333
        %v721 = vunpack.c.h.b16 %v333
        %v722 = vunpack.c.l.b16 %v334
        %v723 = vunpack.c.h.b16 %v334
        %v724 = vunpack.c.l.b16 %v335
        %v725 = vunpack.c.h.b16 %v335
        %v726 = vunpack.c.l.b16 %v336
        %v727 = vunpack.c.h.b16 %v336
        %v728 = vunpack.c.l.b16 %v337
        %v729 = vunpack.c.h.b16 %v337
        %v730 = vunpack.c.l.b16 %v338
        %v731 = vunpack.c.h.b16 %v338
        %v732 = vunpack.c.l.b16 %v339
        %v733 = vunpack.c.h.b16 %v339
        %v734 = vunpack.c.l.b16 %v340
        %v735 = vunpack.c.h.b16 %v340
        %v736 = vunpack.c.l.b16 %v341
        %v737 = vunpack.c.h.b16 %v341
        %v738 = vunpack.c.l.b16 %v342
        %v739 = vunpack.c.h.b16 %v342
        %v740 = vunpack.c.l.b16 %v343
        %v741 = vunpack.c.h.b16 %v343
        %v742 = vunpack.c.l.b16 %v344
        %v743 = vunpack.c.h.b16 %v344
        %v744 = vunpack.c.l.b16 %v345
        %v745 = vunpack.c.h.b16 %v345
        %v746 = vunpack.c.l.b16 %v346
        %v747 = vunpack.c.h.b16 %v346
        %v748 = vunpack.c.l.b16 %v347
        %v749 = vunpack.c.h.b16 %v347
        %v750 = vunpack.c.l.b16 %v348
        %v751 = vunpack.c.h.b16 %v348
        %v752 = vunpack.c.l.b16 %v349
        %v753 = vunpack.c.h.b16 %v349
        %v754 = vunpack.c.l.b16 %v350
        %v755 = vunpack.c.h.b16 %v350
        %v756 = vunpack.c.l.b16 %v351
        %v757 = vunpack.c.h.b16 %v351
        %v758 = vunpack.c.l.b16 %v352
        %v759 = vunpack.c.h.b16 %v352
        %v760 = vunpack.c.l.b16 %v353
        %v761 = vunpack.c.h.b16 %v353
        %v762 = vunpack.c.l.b16 %v354
        %v763 = vunpack.c.h.b16 %v354
        %v764 = vpack.c.b16 %v702, %v700
        %v765 = vpack.c.b16 %v703, %v701
        %v766 = vpack.c.b16 %v706, %v704
        %v767 = vpack.c.b16 %v707, %v705
        %v768 = vpack.c.b16 %v710, %v708
        %v769 = vpack.c.b16 %v711, %v709
        %v770 = vpack.c.b16 %v714, %v712
        %v771 = vpack.c.b16 %v715, %v713
        %v772 = vpack.c.b16 %v718, %v716
        %v773 = vpack.c.b16 %v719, %v717
        %v774 = vpack.c.b16 %v722, %v720
        %v775 = vpack.c.b16 %v723, %v721
        %v776 = vpack.c.b16 %v726, %v724
        %v777 = vpack.c.b16 %v727, %v725
        %v778 = vpack.c.b16 %v730, %v728
        %v779 = vpack.c.b16 %v731, %v729
        %v780 = vpack.c.b16 %v734, %v732
        %v781 = vpack.c.b16 %v735, %v733
        %v782 = vpack.c.b16 %v738, %v736
        %v783 = vpack.c.b16 %v739, %v737
        %v784 = vpack.c.b16 %v742, %v740
        %v785 = vpack.c.b16 %v743, %v741
        %v786 = vpack.c.b16 %v746, %v744
        %v787 = vpack.c.b16 %v747, %v745
        %v788 = vpack.c.b16 %v750, %v748
        %v789 = vpack.c.b16 %v751, %v749
        %v790 = vpack.c.b16 %v754, %v752
        %v791 = vpack.c.b16 %v755, %v753
        %v792 = vpack.c.b16 %v758, %v756
        %v793 = vpack.c.b16 %v759, %v757
        %v794 = vpack.c.b16 %v762, %v760
        %v795 = vpack.c.b16 %v763, %v761
        %828 = vmatprep.subr.bf16.mxu0 %v765
        %829 = vmatpush1.bf16.msra.mxu0 %v764
        %830 = vmatprep.subr.bf16.mxu0 %v767
        %831 = vmatpush1.bf16.msra.mxu0 %v766
        %832 = vmatprep.subr.bf16.mxu0 %v769
        %833 = vmatpush1.bf16.msra.mxu0 %v768
        %834 = vmatprep.subr.bf16.mxu0 %v771
        %835 = vmatpush1.bf16.msra.mxu0 %v770
        %836 = vmatprep.subr.bf16.mxu0 %v773
        %837 = vmatpush1.bf16.msra.mxu0 %v772
        %838 = vmatprep.subr.bf16.mxu0 %v775
        %839 = vmatpush1.bf16.msra.mxu0 %v774
        %840 = vmatprep.subr.bf16.mxu0 %v777
        %841 = vmatpush1.bf16.msra.mxu0 %v776
        %842 = vmatprep.subr.bf16.mxu0 %v779
        %843 = vmatpush1.bf16.msra.mxu0 %v778
        %844 = vmatprep.subr.bf16.mxu0 %v781
        %845 = vmatpush1.bf16.msra.mxu0 %v780
        %846 = vmatprep.subr.bf16.mxu0 %v783
        %847 = vmatpush1.bf16.msra.mxu0 %v782
        %848 = vmatprep.subr.bf16.mxu0 %v785
        %849 = vmatpush1.bf16.msra.mxu0 %v784
        %850 = vmatprep.subr.bf16.mxu0 %v787
        %851 = vmatpush1.bf16.msra.mxu0 %v786
        %852 = vmatprep.subr.bf16.mxu0 %v789
        %853 = vmatpush1.bf16.msra.mxu0 %v788
        %854 = vmatprep.subr.bf16.mxu0 %v791
        %855 = vmatpush1.bf16.msra.mxu0 %v790
        %856 = vmatprep.subr.bf16.mxu0 %v793
        %857 = vmatpush1.bf16.msra.mxu0 %v792
        %858 = vmatprep.subr.bf16.mxu0 %v795
        %859 = vmatpush1.bf16.msra.mxu0 %v794
        %860 = vmatprep.mubr.bf16.mxu0 %v407
        %861 = vmatmul.mubr.bf16.gmra.mrb[0].mxu0 %v406
        %v862 = vpop.f32.mrb[0].mxu0
        %v863 = vadd.f32 %v664, %v862
        %v864 = vpop.f32.mrb[0].mxu0
        %v865 = vadd.f32 %v665, %v864
        %v866 = vpop.f32.mrb[0].mxu0
        %v867 = vadd.f32 %v662, %v866
        %v868 = vpop.f32.mrb[0].mxu0
        %v869 = vadd.f32 %v663, %v868
        %870 = vmatprep.mubr.bf16.mxu0 %v409
        %871 = vmatmul.mubr.bf16.gmra.mrb[0].mxu0 %v408
        %v872 = vpop.f32.mrb[0].mxu0
        %v873 = vadd.f32 %v660, %v872
        %v874 = vpop.f32.mrb[0].mxu0
        %v875 = vadd.f32 %v661, %v874
        %v876 = vpop.f32.mrb[0].mxu0
        %v877 = vadd.f32 %v658, %v876
        %v878 = vpop.f32.mrb[0].mxu0
        %v879 = vadd.f32 %v659, %v878
        %880 = vmatprep.mubr.bf16.mxu0 %v411
        %881 = vmatmul.mubr.bf16.gmra.mrb[0].mxu0 %v410
        %v882 = vpop.f32.mrb[0].mxu0
        %v883 = vadd.f32 %v656, %v882
        %v884 = vpop.f32.mrb[0].mxu0
        %v885 = vadd.f32 %v657, %v884
        %v886 = vpop.f32.mrb[0].mxu0
        %v887 = vadd.f32 %v666, %v886
        %v888 = vpop.f32.mrb[0].mxu0
        %v889 = vadd.f32 %v667, %v888
        %890 = vdwg.mxu0
        %s891 = scalar_lea.vmem [#allocation7], 512
        %v892 = vld [vmem:[%s891] sm:$0xff]
        %v893 = vld [vmem:[%s891 + $0x8] sm:$0xff]
        %v894 = vld [vmem:[%s891 + $0x10] sm:$0xff]
        %v895 = vld [vmem:[%s891 + $0x18] sm:$0xff]
        %v896 = vld [vmem:[%s891 + $0x20] sm:$0xff]
        %v897 = vld [vmem:[%s891 + $0x28] sm:$0xff]
        %v898 = vld [vmem:[%s891 + $0x30] sm:$0xff]
        %v899 = vld [vmem:[%s891 + $0x38] sm:$0xff]
        %v900 = vld [vmem:[%s891 + $0x40] sm:$0xff]
        %v901 = vld [vmem:[%s891 + $0x48] sm:$0xff]
        %v902 = vld [vmem:[%s891 + $0x50] sm:$0xff]
        %v903 = vld [vmem:[%s891 + $0x58] sm:$0xff]
        %v904 = vld [vmem:[%s891 + $0x60] sm:$0xff]
        %v905 = vld [vmem:[%s891 + $0x68] sm:$0xff]
        %v906 = vld [vmem:[%s891 + $0x70] sm:$0xff]
        %v907 = vld [vmem:[%s891 + $0x78] sm:$0xff]
        %v908 = vld [vmem:[%s891 + $0x80] sm:$0xff]
        %v909 = vld [vmem:[%s891 + $0x88] sm:$0xff]
        %v910 = vld [vmem:[%s891 + $0x90] sm:$0xff]
        %v911 = vld [vmem:[%s891 + $0x98] sm:$0xff]
        %v912 = vld [vmem:[%s891 + $0xa0] sm:$0xff]
        %v913 = vld [vmem:[%s891 + $0xa8] sm:$0xff]
        %v914 = vld [vmem:[%s891 + $0xb0] sm:$0xff]
        %v915 = vld [vmem:[%s891 + $0xb8] sm:$0xff]
        %v916 = vld [vmem:[%s891 + $0xc0] sm:$0xff]
        %v917 = vld [vmem:[%s891 + $0xc8] sm:$0xff]
        %v918 = vld [vmem:[%s891 + $0xd0] sm:$0xff]
        %v919 = vld [vmem:[%s891 + $0xd8] sm:$0xff]
        %v920 = vld [vmem:[%s891 + $0xe0] sm:$0xff]
        %v921 = vld [vmem:[%s891 + $0xe8] sm:$0xff]
        %v922 = vld [vmem:[%s891 + $0xf0] sm:$0xff]
        %v923 = vld [vmem:[%s891 + $0xf8] sm:$0xff]
        %v956 = vunpack.c.l.b16 %v892
        %v957 = vunpack.c.h.b16 %v892
        %v958 = vunpack.c.l.b16 %v893
        %v959 = vunpack.c.h.b16 %v893
        %v960 = vunpack.c.l.b16 %v894
        %v961 = vunpack.c.h.b16 %v894
        %v962 = vunpack.c.l.b16 %v895
        %v963 = vunpack.c.h.b16 %v895
        %v964 = vunpack.c.l.b16 %v896
        %v965 = vunpack.c.h.b16 %v896
        %v966 = vunpack.c.l.b16 %v897
        %v967 = vunpack.c.h.b16 %v897
        %v968 = vunpack.c.l.b16 %v898
        %v969 = vunpack.c.h.b16 %v898
        %v970 = vunpack.c.l.b16 %v899
        %v971 = vunpack.c.h.b16 %v899
        %v972 = vunpack.c.l.b16 %v900
        %v973 = vunpack.c.h.b16 %v900
        %v974 = vunpack.c.l.b16 %v901
        %v975 = vunpack.c.h.b16 %v901
        %v976 = vunpack.c.l.b16 %v902
        %v977 = vunpack.c.h.b16 %v902
        %v978 = vunpack.c.l.b16 %v903
        %v979 = vunpack.c.h.b16 %v903
        %v980 = vunpack.c.l.b16 %v904
        %v981 = vunpack.c.h.b16 %v904
        %v982 = vunpack.c.l.b16 %v905
        %v983 = vunpack.c.h.b16 %v905
        %v984 = vunpack.c.l.b16 %v906
        %v985 = vunpack.c.h.b16 %v906
        %v986 = vunpack.c.l.b16 %v907
        %v987 = vunpack.c.h.b16 %v907
        %v988 = vunpack.c.l.b16 %v908
        %v989 = vunpack.c.h.b16 %v908
        %v990 = vunpack.c.l.b16 %v909
        %v991 = vunpack.c.h.b16 %v909
        %v992 = vunpack.c.l.b16 %v910
        %v993 = vunpack.c.h.b16 %v910
        %v994 = vunpack.c.l.b16 %v911
        %v995 = vunpack.c.h.b16 %v911
        %v996 = vunpack.c.l.b16 %v912
        %v997 = vunpack.c.h.b16 %v912
        %v998 = vunpack.c.l.b16 %v913
        %v999 = vunpack.c.h.b16 %v913
        %v1000 = vunpack.c.l.b16 %v914
        %v1001 = vunpack.c.h.b16 %v914
        %v1002 = vunpack.c.l.b16 %v915
        %v1003 = vunpack.c.h.b16 %v915
        %v1004 = vunpack.c.l.b16 %v916
        %v1005 = vunpack.c.h.b16 %v916
        %v1006 = vunpack.c.l.b16 %v917
        %v1007 = vunpack.c.h.b16 %v917
        %v1008 = vunpack.c.l.b16 %v918
        %v1009 = vunpack.c.h.b16 %v918
        %v1010 = vunpack.c.l.b16 %v919
        %v1011 = vunpack.c.h.b16 %v919
        %v1012 = vunpack.c.l.b16 %v920
        %v1013 = vunpack.c.h.b16 %v920
        %v1014 = vunpack.c.l.b16 %v921
        %v1015 = vunpack.c.h.b16 %v921
        %v1016 = vunpack.c.l.b16 %v922
        %v1017 = vunpack.c.h.b16 %v922
        %v1018 = vunpack.c.l.b16 %v923
        %v1019 = vunpack.c.h.b16 %v923
        %v1020 = vpack.c.b16 %v958, %v956
        %v1021 = vpack.c.b16 %v959, %v957
        %v1022 = vpack.c.b16 %v962, %v960
        %v1023 = vpack.c.b16 %v963, %v961
        %v1024 = vpack.c.b16 %v966, %v964
        %v1025 = vpack.c.b16 %v967, %v965
        %v1026 = vpack.c.b16 %v970, %v968
        %v1027 = vpack.c.b16 %v971, %v969
        %v1028 = vpack.c.b16 %v974, %v972
        %v1029 = vpack.c.b16 %v975, %v973
        %v1030 = vpack.c.b16 %v978, %v976
        %v1031 = vpack.c.b16 %v979, %v977
        %v1032 = vpack.c.b16 %v982, %v980
        %v1033 = vpack.c.b16 %v983, %v981
        %v1034 = vpack.c.b16 %v986, %v984
        %v1035 = vpack.c.b16 %v987, %v985
        %v1036 = vpack.c.b16 %v990, %v988
        %v1037 = vpack.c.b16 %v991, %v989
        %v1038 = vpack.c.b16 %v994, %v992
        %v1039 = vpack.c.b16 %v995, %v993
        %v1040 = vpack.c.b16 %v998, %v996
        %v1041 = vpack.c.b16 %v999, %v997
        %v1042 = vpack.c.b16 %v1002, %v1000
        %v1043 = vpack.c.b16 %v1003, %v1001
        %v1044 = vpack.c.b16 %v1006, %v1004
        %v1045 = vpack.c.b16 %v1007, %v1005
        %v1046 = vpack.c.b16 %v1010, %v1008
        %v1047 = vpack.c.b16 %v1011, %v1009
        %v1048 = vpack.c.b16 %v1014, %v1012
        %v1049 = vpack.c.b16 %v1015, %v1013
        %v1050 = vpack.c.b16 %v1018, %v1016
        %v1051 = vpack.c.b16 %v1019, %v1017
        %1084 = vmatprep.subr.bf16.mxu0 %v1021
        %1085 = vmatpush1.bf16.msra.mxu0 %v1020
        %1086 = vmatprep.subr.bf16.mxu0 %v1023
        %1087 = vmatpush1.bf16.msra.mxu0 %v1022
        %1088 = vmatprep.subr.bf16.mxu0 %v1025
        %1089 = vmatpush1.bf16.msra.mxu0 %v1024
        %1090 = vmatprep.subr.bf16.mxu0 %v1027
        %1091 = vmatpush1.bf16.msra.mxu0 %v1026
        %1092 = vmatprep.subr.bf16.mxu0 %v1029
        %1093 = vmatpush1.bf16.msra.mxu0 %v1028
        %1094 = vmatprep.subr.bf16.mxu0 %v1031
        %1095 = vmatpush1.bf16.msra.mxu0 %v1030
        %1096 = vmatprep.subr.bf16.mxu0 %v1033
        %1097 = vmatpush1.bf16.msra.mxu0 %v1032
        %1098 = vmatprep.subr.bf16.mxu0 %v1035
        %1099 = vmatpush1.bf16.msra.mxu0 %v1034
        %1100 = vmatprep.subr.bf16.mxu0 %v1037
        %1101 = vmatpush1.bf16.msra.mxu0 %v1036
        %1102 = vmatprep.subr.bf16.mxu0 %v1039
        %1103 = vmatpush1.bf16.msra.mxu0 %v1038
        %1104 = vmatprep.subr.bf16.mxu0 %v1041
        %1105 = vmatpush1.bf16.msra.mxu0 %v1040
        %1106 = vmatprep.subr.bf16.mxu0 %v1043
        %1107 = vmatpush1.bf16.msra.mxu0 %v1042
        %1108 = vmatprep.subr.bf16.mxu0 %v1045
        %1109 = vmatpush1.bf16.msra.mxu0 %v1044
        %1110 = vmatprep.subr.bf16.mxu0 %v1047
        %1111 = vmatpush1.bf16.msra.mxu0 %v1046
        %1112 = vmatprep.subr.bf16.mxu0 %v1049
        %1113 = vmatpush1.bf16.msra.mxu0 %v1048
        %1114 = vmatprep.subr.bf16.mxu0 %v1051
        %1115 = vmatpush1.bf16.msra.mxu0 %v1050
        %1116 = vmatprep.mubr.bf16.mxu0 %v407
        %1117 = vmatmul.mubr.bf16.gmra.mrb[0].mxu0 %v406
        %v1118 = vpop.f32.mrb[0].mxu0
        %v1119 = vadd.f32 0.0, %v1118
        %v1120 = vpop.f32.mrb[0].mxu0
        %v1121 = vadd.f32 0.0, %v1120
        %v1122 = vpop.f32.mrb[0].mxu0
        %v1123 = vadd.f32 0.0, %v1122
        %v1124 = vpop.f32.mrb[0].mxu0
        %v1125 = vadd.f32 0.0, %v1124
        %1126 = vmatprep.mubr.bf16.mxu0 %v409
        %1127 = vmatmul.mubr.bf16.gmra.mrb[0].mxu0 %v408
        %v1128 = vpop.f32.mrb[0].mxu0
        %v1129 = vadd.f32 0.0, %v1128
        %v1130 = vpop.f32.mrb[0].mxu0
        %v1131 = vadd.f32 0.0, %v1130
        %v1132 = vpop.f32.mrb[0].mxu0
        %v1133 = vadd.f32 0.0, %v1132
        %v1134 = vpop.f32.mrb[0].mxu0
        %v1135 = vadd.f32 0.0, %v1134
        %1136 = vmatprep.mubr.bf16.mxu0 %v411
        %1137 = vmatmul.mubr.bf16.gmra.mrb[0].mxu0 %v410
        %v1138 = vpop.f32.mrb[0].mxu0
        %v1139 = vadd.f32 0.0, %v1138
        %v1140 = vpop.f32.mrb[0].mxu0
        %v1141 = vadd.f32 0.0, %v1140
        %v1142 = vpop.f32.mrb[0].mxu0
        %v1143 = vadd.f32 0.0, %v1142
        %v1144 = vpop.f32.mrb[0].mxu0
        %v1145 = vadd.f32 0.0, %v1144
        %1146 = vdwg.mxu0
        %v1147 = vrot.slane %v1119, 2
        %v1148 = vrot.slane %v1121, 2
        %v1149 = vrot.slane %v1123, 2
        %v1150 = vrot.slane %v1125, 2
        %v1151 = vrot.slane %v1129, 2
        %v1152 = vrot.slane %v1131, 2
        %v1153 = vrot.slane %v1133, 2
        %v1154 = vrot.slane %v1135, 2
        %v1155 = vrot.slane %v1139, 2
        %v1156 = vrot.slane %v1141, 2
        %v1157 = vrot.slane %v1143, 2
        %v1158 = vrot.slane %v1145, 2
        %vm1159 = vcmp.lt.s32.totalorder %v654, 6
        %v1160 = vsel %vm1159, %v1155, %v1157
        %v1161 = vsel %vm1159, %v1156, %v1158
        %v1162 = vsel %vm1159, %v1153, %v1155
        %v1163 = vsel %vm1159, %v1154, %v1156
        %v1164 = vsel %vm1159, %v1151, %v1153
        %v1165 = vsel %vm1159, %v1152, %v1154
        %v1166 = vsel %vm1159, %v1149, %v1151
        %v1167 = vsel %vm1159, %v1150, %v1152
        %v1168 = vsel %vm1159, %v1147, %v1149
        %v1169 = vsel %vm1159, %v1148, %v1150
        %v1170 = vsel %vm1159, %v1157, %v1147
        %v1171 = vsel %vm1159, %v1158, %v1148
        %v1172 = vadd.f32 %v863, %v1168
        %v1173 = vadd.f32 %v865, %v1169
        %v1174 = vadd.f32 %v867, %v1166
        %v1175 = vadd.f32 %v869, %v1167
        %v1176 = vadd.f32 %v873, %v1164
        %v1177 = vadd.f32 %v875, %v1165
        %v1178 = vadd.f32 %v877, %v1162
        %v1179 = vadd.f32 %v879, %v1163
        %v1180 = vadd.f32 %v883, %v1160
        %v1181 = vadd.f32 %v885, %v1161
        %v1182 = vadd.f32 %v887, %v1170
        %v1183 = vadd.f32 %v889, %v1171
        %v1184 = vld [vmem:[%s4] sm:$0x3]
        %v1186 = vlaneseq
        %v1187 = vshrl.u32 %v1186, 7
        %v1188 = vsub.s32 0, %v1187
        %v1189 = vrot.slane %v1184, %v1188
        %v1190 = vlaneseq
        %v1191 = vshrl.u32 %v1190, 7
        %v1192 = vsub.s32 1, %v1191
        %v1193 = vrot.slane %v1184, %v1192
        %v1196 = vadd.f32 %v1172, %v1189
        %v1197 = vadd.f32 %v1173, %v1193
        %v1198 = vadd.f32 %v1174, %v1189
        %v1199 = vadd.f32 %v1175, %v1193
        %v1200 = vadd.f32 %v1176, %v1189
        %v1201 = vadd.f32 %v1177, %v1193
        %v1202 = vadd.f32 %v1178, %v1189
        %v1203 = vadd.f32 %v1179, %v1193
        %v1204 = vadd.f32 %v1180, %v1189
        %v1205 = vadd.f32 %v1181, %v1193
        %v1206 = vadd.f32 %v1182, %v1189
        %v1207 = vadd.f32 %v1183, %v1193
        %v1208 = vxor.u32 %v1196, 2147483648
        %v1209 = vxor.u32 %v1198, 2147483648
        %v1210 = vxor.u32 %v1200, 2147483648
        %v1211 = vxor.u32 %v1202, 2147483648
        %v1212 = vxor.u32 %v1204, 2147483648
        %v1213 = vxor.u32 %v1206, 2147483648
        %v1214 = vmul.f32 %v1208, 1.442695
        %v1215 = vpow.pop %v1214
        %v1216 = vmul.f32 %v1209, 1.442695
        %v1217 = vpow.pop %v1216
        %v1218 = vmul.f32 %v1210, 1.442695
        %v1219 = vpow.pop %v1218
        %v1220 = vmul.f32 %v1211, 1.442695
        %v1221 = vpow.pop %v1220
        %v1222 = vmul.f32 %v1212, 1.442695
        %v1223 = vpow.pop %v1222
        %v1224 = vmul.f32 %v1213, 1.442695
        %v1225 = vpow.pop %v1224
        %v1226 = vadd.f32 %v1215, 1.0
        %v1227 = vadd.f32 %v1217, 1.0
        %v1228 = vadd.f32 %v1219, 1.0
        %v1229 = vadd.f32 %v1221, 1.0
        %v1230 = vadd.f32 %v1223, 1.0
        %v1231 = vadd.f32 %v1225, 1.0
        %v1232 = vrcp.pop %v1226
        %v1233 = vmul.f32 1.0, %v1232
        %v1234 = vrcp.pop %v1227
        %v1235 = vmul.f32 1.0, %v1234
        %v1236 = vrcp.pop %v1228
        %v1237 = vmul.f32 1.0, %v1236
        %v1238 = vrcp.pop %v1229
        %v1239 = vmul.f32 1.0, %v1238
        %v1240 = vrcp.pop %v1230
        %v1241 = vmul.f32 1.0, %v1240
        %v1242 = vrcp.pop %v1231
        %v1243 = vmul.f32 1.0, %v1242
        %v1244 = vld [vmem:[%s273] sm:$0xf]
        %v1245 = vld [vmem:[%s273 + $0x4] sm:$0xf]
        %v1246 = vld [vmem:[%s273 + $0x8] sm:$0xf]
        %v1247 = vld [vmem:[%s273 + $0xc] sm:$0xf]
        %v1248 = vld [vmem:[%s273 + $0x10] sm:$0xf]
        %v1249 = vld [vmem:[%s273 + $0x14] sm:$0xf]
        %v1250 = vunpack.c.l.bf16 %v1244
        %v1251 = vunpack.c.l.bf16 %v1245
        %v1252 = vunpack.c.l.bf16 %v1246
        %v1253 = vunpack.c.l.bf16 %v1247
        %v1254 = vunpack.c.l.bf16 %v1248
        %v1255 = vunpack.c.l.bf16 %v1249
        %v1256 = vmul.f32 %v1250, %v1233
        %v1257 = vmul.f32 %v1251, %v1235
        %v1258 = vmul.f32 %v1252, %v1237
        %v1259 = vmul.f32 %v1253, %v1239
        %v1260 = vmul.f32 %v1254, %v1241
        %v1261 = vmul.f32 %v1255, %v1243
        %v1262 = vpack.c.bf16 %v1257, %v1256
        %v1263 = vpack.c.bf16 %v1259, %v1258
        %v1264 = vpack.c.bf16 %v1261, %v1260
        %v1265 = vld [vmem:[#allocation8] sm:$0xf]
        %v1266 = vld [vmem:[#allocation8 + $0x4] sm:$0xf]
        %v1267 = vld [vmem:[#allocation8 + $0x8] sm:$0xf]
        %v1268 = vld [vmem:[#allocation8 + $0xc] sm:$0xf]
        %v1269 = vld [vmem:[#allocation8 + $0x10] sm:$0xf]
        %v1270 = vld [vmem:[#allocation8 + $0x14] sm:$0xf]
        %v1271 = vld [vmem:[#allocation8 + $0x18] sm:$0xf]
        %v1272 = vld [vmem:[#allocation8 + $0x1c] sm:$0xf]
        %v1273 = vld [vmem:[#allocation8 + $0x20] sm:$0xf]
        %v1274 = vld [vmem:[#allocation8 + $0x24] sm:$0xf]
        %v1275 = vld [vmem:[#allocation8 + $0x28] sm:$0xf]
        %v1276 = vld [vmem:[#allocation8 + $0x2c] sm:$0xf]
        %v1277 = vld [vmem:[#allocation8 + $0x30] sm:$0xf]
        %v1278 = vld [vmem:[#allocation8 + $0x34] sm:$0xf]
        %v1279 = vld [vmem:[#allocation8 + $0x38] sm:$0xf]
        %v1280 = vld [vmem:[#allocation8 + $0x3c] sm:$0xf]
        %v1297 = vunpack.c.l.b16 %v1265
        %v1298 = vunpack.c.l.b16 %v1266
        %v1299 = vunpack.c.l.b16 %v1267
        %v1300 = vunpack.c.l.b16 %v1268
        %v1301 = vunpack.c.l.b16 %v1269
        %v1302 = vunpack.c.l.b16 %v1270
        %v1303 = vunpack.c.l.b16 %v1271
        %v1304 = vunpack.c.l.b16 %v1272
        %v1305 = vunpack.c.l.b16 %v1273
        %v1306 = vunpack.c.l.b16 %v1274
        %v1307 = vunpack.c.l.b16 %v1275
        %v1308 = vunpack.c.l.b16 %v1276
        %v1309 = vunpack.c.l.b16 %v1277
        %v1310 = vunpack.c.l.b16 %v1278
        %v1311 = vunpack.c.l.b16 %v1279
        %v1312 = vunpack.c.l.b16 %v1280
        %v1313 = vpack.c.b16 %v1298, %v1297
        %v1314 = vpack.c.b16 %v1300, %v1299
        %v1315 = vpack.c.b16 %v1302, %v1301
        %v1316 = vpack.c.b16 %v1304, %v1303
        %v1317 = vpack.c.b16 %v1306, %v1305
        %v1318 = vpack.c.b16 %v1308, %v1307
        %v1319 = vpack.c.b16 %v1310, %v1309
        %v1320 = vpack.c.b16 %v1312, %v1311
        %1329 = vmatprep.subr.bf16.mxu0 0
        %1330 = vmatpush1.bf16.msra.mxu0 %v1313
        %1331 = vmatprep.subr.bf16.mxu0 0
        %1332 = vmatpush1.bf16.msra.mxu0 %v1314
        %1333 = vmatprep.subr.bf16.mxu0 0
        %1334 = vmatpush1.bf16.msra.mxu0 %v1315
        %1335 = vmatprep.subr.bf16.mxu0 0
        %1336 = vmatpush1.bf16.msra.mxu0 %v1316
        %1337 = vmatprep.subr.bf16.mxu0 0
        %1338 = vmatpush1.bf16.msra.mxu0 %v1317
        %1339 = vmatprep.subr.bf16.mxu0 0
        %1340 = vmatpush1.bf16.msra.mxu0 %v1318
        %1341 = vmatprep.subr.bf16.mxu0 0
        %1342 = vmatpush1.bf16.msra.mxu0 %v1319
        %1343 = vmatprep.subr.bf16.mxu0 0
        %1344 = vmatpush1.bf16.msra.mxu0 %v1320
        %1345 = vmatprep.subr.bf16.mxu0 0
        %1346 = vmatpush1.bf16.msra.mxu0 0
        %1347 = vmatprep.subr.bf16.mxu0 0
        %1348 = vmatpush1.bf16.msra.mxu0 0
        %1349 = vmatprep.subr.bf16.mxu0 0
        %1350 = vmatpush1.bf16.msra.mxu0 0
        %1351 = vmatprep.subr.bf16.mxu0 0
        %1352 = vmatpush1.bf16.msra.mxu0 0
        %1353 = vmatprep.subr.bf16.mxu0 0
        %1354 = vmatpush1.bf16.msra.mxu0 0
        %1355 = vmatprep.subr.bf16.mxu0 0
        %1356 = vmatpush1.bf16.msra.mxu0 0
        %1357 = vmatprep.subr.bf16.mxu0 0
        %1358 = vmatpush1.bf16.msra.mxu0 0
        %1359 = vmatprep.subr.bf16.mxu0 0
        %1360 = vmatpush1.bf16.msra.mxu0 0
        %1361 = vmatprep.mubr.bf16.mxu0 0
        %1362 = vmatmul.mubr.bf16.gmra.mrb[0].mxu0 %v1262
        %v1363 = vpop.f32.mrb[0].mxu0
        %v1364 = vadd.f32 0.0, %v1363
        %v1365 = vpop.f32.mrb[0].mxu0
        %v1366 = vpop.f32.mrb[0].mxu0
        %v1367 = vadd.f32 0.0, %v1366
        %v1368 = vpop.f32.mrb[0].mxu0
        %1369 = vmatprep.mubr.bf16.mxu0 0
        %1370 = vmatmul.mubr.bf16.gmra.mrb[0].mxu0 %v1263
        %v1371 = vpop.f32.mrb[0].mxu0
        %v1372 = vadd.f32 0.0, %v1371
        %v1373 = vpop.f32.mrb[0].mxu0
        %v1374 = vpop.f32.mrb[0].mxu0
        %v1375 = vadd.f32 0.0, %v1374
        %v1376 = vpop.f32.mrb[0].mxu0
        %1377 = vmatprep.mubr.bf16.mxu0 0
        %1378 = vmatmul.mubr.bf16.gmra.mrb[0].mxu0 %v1264
        %v1379 = vpop.f32.mrb[0].mxu0
        %v1380 = vadd.f32 0.0, %v1379
        %v1381 = vpop.f32.mrb[0].mxu0
        %v1382 = vpop.f32.mrb[0].mxu0
        %v1383 = vadd.f32 0.0, %v1382
        %v1384 = vpop.f32.mrb[0].mxu0
        %1385 = vdwg.mxu0
        %v1386 = vrot.slane %v1364, 7
        %v1387 = vrot.slane %v1367, 7
        %v1388 = vrot.slane %v1372, 7
        %v1389 = vrot.slane %v1375, 7
        %v1390 = vrot.slane %v1380, 7
        %v1391 = vrot.slane %v1383, 7
        %vm1392 = vcmp.lt.s32.totalorder %v654, 1
        %v1393 = vsel %vm1392, %v1390, %v1391
        %v1394 = vsel %vm1392, %v1389, %v1390
        %v1395 = vsel %vm1392, %v1388, %v1389
        %v1396 = vsel %vm1392, %v1387, %v1388
        %v1397 = vsel %vm1392, %v1386, %v1387
        %v1398 = vsel %vm1392, %v1391, %v1386
        %v1399 = vadd.f32 %v1197, %v1398
        %v1400 = vadd.f32 %v1199, %v1397
        %v1401 = vadd.f32 %v1201, %v1396
        %v1402 = vadd.f32 %v1203, %v1395
        %v1403 = vadd.f32 %v1205, %v1394
        %v1404 = vadd.f32 %v1207, %v1393
        %s1405 = scalar_lea.vmem [#allocation8], 64
        %v1406 = vld [vmem:[%s1405] sm:$0xf]
        %v1407 = vld [vmem:[%s1405 + $0x4] sm:$0xf]
        %v1408 = vld [vmem:[%s1405 + $0x8] sm:$0xf]
        %v1409 = vld [vmem:[%s1405 + $0xc] sm:$0xf]
        %v1410 = vld [vmem:[%s1405 + $0x10] sm:$0xf]
        %v1411 = vld [vmem:[%s1405 + $0x14] sm:$0xf]
        %v1412 = vld [vmem:[%s1405 + $0x18] sm:$0xf]
        %v1413 = vld [vmem:[%s1405 + $0x1c] sm:$0xf]
        %v1414 = vld [vmem:[%s1405 + $0x20] sm:$0xf]
        %v1415 = vld [vmem:[%s1405 + $0x24] sm:$0xf]
        %v1416 = vld [vmem:[%s1405 + $0x28] sm:$0xf]
        %v1417 = vld [vmem:[%s1405 + $0x2c] sm:$0xf]
        %v1418 = vld [vmem:[%s1405 + $0x30] sm:$0xf]
        %v1419 = vld [vmem:[%s1405 + $0x34] sm:$0xf]
        %v1420 = vld [vmem:[%s1405 + $0x38] sm:$0xf]
        %v1421 = vld [vmem:[%s1405 + $0x3c] sm:$0xf]
        %v1438 = vunpack.c.l.b16 %v1406
        %v1439 = vunpack.c.l.b16 %v1407
        %v1440 = vunpack.c.l.b16 %v1408
        %v1441 = vunpack.c.l.b16 %v1409
        %v1442 = vunpack.c.l.b16 %v1410
        %v1443 = vunpack.c.l.b16 %v1411
        %v1444 = vunpack.c.l.b16 %v1412
        %v1445 = vunpack.c.l.b16 %v1413
        %v1446 = vunpack.c.l.b16 %v1414
        %v1447 = vunpack.c.l.b16 %v1415
        %v1448 = vunpack.c.l.b16 %v1416
        %v1449 = vunpack.c.l.b16 %v1417
        %v1450 = vunpack.c.l.b16 %v1418
        %v1451 = vunpack.c.l.b16 %v1419
        %v1452 = vunpack.c.l.b16 %v1420
        %v1453 = vunpack.c.l.b16 %v1421
        %v1454 = vpack.c.b16 %v1439, %v1438
        %v1455 = vpack.c.b16 %v1441, %v1440
        %v1456 = vpack.c.b16 %v1443, %v1442
        %v1457 = vpack.c.b16 %v1445, %v1444
        %v1458 = vpack.c.b16 %v1447, %v1446
        %v1459 = vpack.c.b16 %v1449, %v1448
        %v1460 = vpack.c.b16 %v1451, %v1450
        %v1461 = vpack.c.b16 %v1453, %v1452
        %1470 = vmatprep.subr.bf16.mxu0 0
        %1471 = vmatpush1.bf16.msra.mxu0 %v1454
        %1472 = vmatprep.subr.bf16.mxu0 0
        %1473 = vmatpush1.bf16.msra.mxu0 %v1455
        %1474 = vmatprep.subr.bf16.mxu0 0
        %1475 = vmatpush1.bf16.msra.mxu0 %v1456
        %1476 = vmatprep.subr.bf16.mxu0 0
        %1477 = vmatpush1.bf16.msra.mxu0 %v1457
        %1478 = vmatprep.subr.bf16.mxu0 0
        %1479 = vmatpush1.bf16.msra.mxu0 %v1458
        %1480 = vmatprep.subr.bf16.mxu0 0
        %1481 = vmatpush1.bf16.msra.mxu0 %v1459
        %1482 = vmatprep.subr.bf16.mxu0 0
        %1483 = vmatpush1.bf16.msra.mxu0 %v1460
        %1484 = vmatprep.subr.bf16.mxu0 0
        %1485 = vmatpush1.bf16.msra.mxu0 %v1461
        %1486 = vmatprep.subr.bf16.mxu0 0
        %1487 = vmatpush1.bf16.msra.mxu0 0
        %1488 = vmatprep.subr.bf16.mxu0 0
        %1489 = vmatpush1.bf16.msra.mxu0 0
        %1490 = vmatprep.subr.bf16.mxu0 0
        %1491 = vmatpush1.bf16.msra.mxu0 0
        %1492 = vmatprep.subr.bf16.mxu0 0
        %1493 = vmatpush1.bf16.msra.mxu0 0
        %1494 = vmatprep.subr.bf16.mxu0 0
        %1495 = vmatpush1.bf16.msra.mxu0 0
        %1496 = vmatprep.subr.bf16.mxu0 0
        %1497 = vmatpush1.bf16.msra.mxu0 0
        %1498 = vmatprep.subr.bf16.mxu0 0
        %1499 = vmatpush1.bf16.msra.mxu0 0
        %1500 = vmatprep.subr.bf16.mxu0 0
        %1501 = vmatpush1.bf16.msra.mxu0 0
        %1502 = vmatprep.mubr.bf16.mxu0 0
        %1503 = vmatmul.mubr.bf16.gmra.mrb[0].mxu0 %v1262
        %v1504 = vpop.f32.mrb[0].mxu0
        %v1505 = vadd.f32 0.0, %v1504
        %v1506 = vpop.f32.mrb[0].mxu0
        %v1507 = vpop.f32.mrb[0].mxu0
        %v1508 = vadd.f32 0.0, %v1507
        %v1509 = vpop.f32.mrb[0].mxu0
        %1510 = vmatprep.mubr.bf16.mxu0 0
        %1511 = vmatmul.mubr.bf16.gmra.mrb[0].mxu0 %v1263
        %v1512 = vpop.f32.mrb[0].mxu0
        %v1513 = vadd.f32 0.0, %v1512
        %v1514 = vpop.f32.mrb[0].mxu0
        %v1515 = vpop.f32.mrb[0].mxu0
        %v1516 = vadd.f32 0.0, %v1515
        %v1517 = vpop.f32.mrb[0].mxu0
        %1518 = vmatprep.mubr.bf16.mxu0 0
        %1519 = vmatmul.mubr.bf16.gmra.mrb[0].mxu0 %v1264
        %v1520 = vpop.f32.mrb[0].mxu0
        %v1521 = vadd.f32 0.0, %v1520
        %v1522 = vpop.f32.mrb[0].mxu0
        %v1523 = vpop.f32.mrb[0].mxu0
        %v1524 = vadd.f32 0.0, %v1523
        %v1525 = vpop.f32.mrb[0].mxu0
        %1526 = vdwg.mxu0
        %v1527 = vadd.f32 %v1399, %v1505
        %v1528 = vadd.f32 %v1400, %v1508
        %v1529 = vadd.f32 %v1401, %v1513
        %v1530 = vadd.f32 %v1402, %v1516
        %v1531 = vadd.f32 %v1403, %v1521
        %v1532 = vadd.f32 %v1404, %v1524
        %s1533 = scalar_lea.vmem [#allocation8], 128
        %v1534 = vld [vmem:[%s1533] sm:$0xf]
        %v1535 = vld [vmem:[%s1533 + $0x4] sm:$0xf]
        %v1536 = vld [vmem:[%s1533 + $0x8] sm:$0xf]
        %v1537 = vld [vmem:[%s1533 + $0xc] sm:$0xf]
        %v1538 = vld [vmem:[%s1533 + $0x10] sm:$0xf]
        %v1539 = vld [vmem:[%s1533 + $0x14] sm:$0xf]
        %v1540 = vld [vmem:[%s1533 + $0x18] sm:$0xf]
        %v1541 = vld [vmem:[%s1533 + $0x1c] sm:$0xf]
        %v1542 = vld [vmem:[%s1533 + $0x20] sm:$0xf]
        %v1543 = vld [vmem:[%s1533 + $0x24] sm:$0xf]
        %v1544 = vld [vmem:[%s1533 + $0x28] sm:$0xf]
        %v1545 = vld [vmem:[%s1533 + $0x2c] sm:$0xf]
        %v1546 = vld [vmem:[%s1533 + $0x30] sm:$0xf]
        %v1547 = vld [vmem:[%s1533 + $0x34] sm:$0xf]
        %v1548 = vld [vmem:[%s1533 + $0x38] sm:$0xf]
        %v1549 = vld [vmem:[%s1533 + $0x3c] sm:$0xf]
        %v1566 = vunpack.c.l.b16 %v1534
        %v1567 = vunpack.c.l.b16 %v1535
        %v1568 = vunpack.c.l.b16 %v1536
        %v1569 = vunpack.c.l.b16 %v1537
        %v1570 = vunpack.c.l.b16 %v1538
        %v1571 = vunpack.c.l.b16 %v1539
        %v1572 = vunpack.c.l.b16 %v1540
        %v1573 = vunpack.c.l.b16 %v1541
        %v1574 = vunpack.c.l.b16 %v1542
        %v1575 = vunpack.c.l.b16 %v1543
        %v1576 = vunpack.c.l.b16 %v1544
        %v1577 = vunpack.c.l.b16 %v1545
        %v1578 = vunpack.c.l.b16 %v1546
        %v1579 = vunpack.c.l.b16 %v1547
        %v1580 = vunpack.c.l.b16 %v1548
        %v1581 = vunpack.c.l.b16 %v1549
        %v1582 = vpack.c.b16 %v1567, %v1566
        %v1583 = vpack.c.b16 %v1569, %v1568
        %v1584 = vpack.c.b16 %v1571, %v1570
        %v1585 = vpack.c.b16 %v1573, %v1572
        %v1586 = vpack.c.b16 %v1575, %v1574
        %v1587 = vpack.c.b16 %v1577, %v1576
        %v1588 = vpack.c.b16 %v1579, %v1578
        %v1589 = vpack.c.b16 %v1581, %v1580
        %1598 = vmatprep.subr.bf16.mxu0 0
        %1599 = vmatpush1.bf16.msra.mxu0 %v1582
        %1600 = vmatprep.subr.bf16.mxu0 0
        %1601 = vmatpush1.bf16.msra.mxu0 %v1583
        %1602 = vmatprep.subr.bf16.mxu0 0
        %1603 = vmatpush1.bf16.msra.mxu0 %v1584
        %1604 = vmatprep.subr.bf16.mxu0 0
        %1605 = vmatpush1.bf16.msra.mxu0 %v1585
        %1606 = vmatprep.subr.bf16.mxu0 0
        %1607 = vmatpush1.bf16.msra.mxu0 %v1586
        %1608 = vmatprep.subr.bf16.mxu0 0
        %1609 = vmatpush1.bf16.msra.mxu0 %v1587
        %1610 = vmatprep.subr.bf16.mxu0 0
        %1611 = vmatpush1.bf16.msra.mxu0 %v1588
        %1612 = vmatprep.subr.bf16.mxu0 0
        %1613 = vmatpush1.bf16.msra.mxu0 %v1589
        %1614 = vmatprep.subr.bf16.mxu0 0
        %1615 = vmatpush1.bf16.msra.mxu0 0
        %1616 = vmatprep.subr.bf16.mxu0 0
        %1617 = vmatpush1.bf16.msra.mxu0 0
        %1618 = vmatprep.subr.bf16.mxu0 0
        %1619 = vmatpush1.bf16.msra.mxu0 0
        %1620 = vmatprep.subr.bf16.mxu0 0
        %1621 = vmatpush1.bf16.msra.mxu0 0
        %1622 = vmatprep.subr.bf16.mxu0 0
        %1623 = vmatpush1.bf16.msra.mxu0 0
        %1624 = vmatprep.subr.bf16.mxu0 0
        %1625 = vmatpush1.bf16.msra.mxu0 0
        %1626 = vmatprep.subr.bf16.mxu0 0
        %1627 = vmatpush1.bf16.msra.mxu0 0
        %1628 = vmatprep.subr.bf16.mxu0 0
        %1629 = vmatpush1.bf16.msra.mxu0 0
        %1630 = vmatprep.mubr.bf16.mxu0 0
        %1631 = vmatmul.mubr.bf16.gmra.mrb[0].mxu0 %v1262
        %v1632 = vpop.f32.mrb[0].mxu0
        %v1633 = vadd.f32 0.0, %v1632
        %v1634 = vpop.f32.mrb[0].mxu0
        %v1635 = vpop.f32.mrb[0].mxu0
        %v1636 = vadd.f32 0.0, %v1635
        %v1637 = vpop.f32.mrb[0].mxu0
        %1638 = vmatprep.mubr.bf16.mxu0 0
        %1639 = vmatmul.mubr.bf16.gmra.mrb[0].mxu0 %v1263
        %v1640 = vpop.f32.mrb[0].mxu0
        %v1641 = vadd.f32 0.0, %v1640
        %v1642 = vpop.f32.mrb[0].mxu0
        %v1643 = vpop.f32.mrb[0].mxu0
        %v1644 = vadd.f32 0.0, %v1643
        %v1645 = vpop.f32.mrb[0].mxu0
        %1646 = vmatprep.mubr.bf16.mxu0 0
        %1647 = vmatmul.mubr.bf16.gmra.mrb[0].mxu0 %v1264
        %v1648 = vpop.f32.mrb[0].mxu0
        %v1649 = vadd.f32 0.0, %v1648
        %v1650 = vpop.f32.mrb[0].mxu0
        %v1651 = vpop.f32.mrb[0].mxu0
        %v1652 = vadd.f32 0.0, %v1651
        %v1653 = vpop.f32.mrb[0].mxu0
        %1654 = vdwg.mxu0
        %v1655 = vrot.slane %v1633, 1
        %v1656 = vrot.slane %v1636, 1
        %v1657 = vrot.slane %v1641, 1
        %v1658 = vrot.slane %v1644, 1
        %v1659 = vrot.slane %v1649, 1
        %v1660 = vrot.slane %v1652, 1
        %v1661 = vsel %vm655, %v1659, %v1660
        %v1662 = vsel %vm655, %v1658, %v1659
        %v1663 = vsel %vm655, %v1657, %v1658
        %v1664 = vsel %vm655, %v1656, %v1657
        %v1665 = vsel %vm655, %v1655, %v1656
        %v1666 = vsel %vm655, %v1660, %v1655
        %v1667 = vadd.f32 %v1527, %v1665
        %v1668 = vadd.f32 %v1528, %v1664
        %v1669 = vadd.f32 %v1529, %v1663
        %v1670 = vadd.f32 %v1530, %v1662
        %v1671 = vadd.f32 %v1531, %v1661
        %v1672 = vadd.f32 %v1532, %v1666
        %v1673 = vtanh.pop %v1667
        %v1674 = vtanh.pop %v1668
        %v1675 = vtanh.pop %v1669
        %v1676 = vtanh.pop %v1670
        %v1677 = vtanh.pop %v1671
        %v1678 = vtanh.pop %v1672
        %1679 = vst [vmem:[%s312] sm:$0xff] %v1673
        %1680 = vst [vmem:[%s312 + $0x8] sm:$0xff] %v1674
        %1681 = vst [vmem:[%s312 + $0x10] sm:$0xff] %v1675
        %1682 = vst [vmem:[%s312 + $0x18] sm:$0xff] %v1676
        %1683 = vst [vmem:[%s312 + $0x20] sm:$0xff] %v1677
        %1684 = vst [vmem:[%s312 + $0x28] sm:$0xff] %v1678
        %s1685 = sand.u32 %s149, 1
        %s1686 = scalar_lea.sflag [#allocation4], %s1685
        %s1687 = sand.u32 %s149, 1
        %s1688 = smul.addr %s1687, 48
        %s1689 = scalar_lea.vmem [#allocation10], %s1688
        // Predicated region
        $region57: #{tpu_custom_call.1} parent=39 // pred_check
          %p1690 = pneg %p159
        $region58: #{tpu_custom_call.1} parent=39 // pred_check_branch
          %1692 = sbr.rel (%p1690) target = $region60
        $region59: #{tpu_custom_call.1} parent=39 // pred_region
          %s1693 = smul.u32 6, %s26
          %s1695 = ssub.s32 768, 768
          %1696 = vsyncadd %s1686, %s1695
          %s1697 = smul.addr %s1693, 128
          %s1698 = scalar_lea.hbm %s5, %s1697
          %s1699 = sshll.u32 %s1689, 4
          %s1700 = int_to_ptr.vmem [resolvable:$true] %s1699
          %1705 = dma.vmem_to_hbm [thread:$0]  %s1700, 768, %s1698, %s1686, 128, 128, 8
        $region60: #{tpu_custom_call.1} parent=39 // pred_fallthru
          _
      $region40: #{tpu_custom_call.1} parent=5 // pred_fallthru
        _
      %p1706 = scmp.le.s32.totalorder 2, %s21
      // Predicated region
      $region61: #{tpu_custom_call.1} parent=5 // pred_check
        %p1707 = pneg %p1706
      $region62: #{tpu_custom_call.1} parent=5 // pred_check_branch
        %1709 = sbr.rel (%p1707) target = $region64
      $region63: #{tpu_custom_call.1} parent=5 // pred_region
        %s1710 = ssub.s32 %s21, 2
        // Predicated region
        $region65: #{tpu_custom_call.1} parent=63 // pred_check
          %p1711 = pneg %p165
        $region66: #{tpu_custom_call.1} parent=63 // pred_check_branch
          %1713 = sbr.rel (%p1711) target = $region68
        $region67: #{tpu_custom_call.1} parent=63 // pred_region
          %s1714 = sand.u32 %s150, 1
          %s1715 = scalar_lea.sflag [#allocation4], %s1714
          %s1716 = sand.u32 %s150, 1
          %s1717 = smul.addr %s1716, 48
          %s1718 = scalar_lea.vmem [#allocation10], %s1717
          %1719 = dma.done %s1715, 768
        $region68: #{tpu_custom_call.1} parent=63 // pred_fallthru
          _
      $region64: #{tpu_custom_call.1} parent=5 // pred_fallthru
        _
    $region6: #{tpu_custom_call.1} parent=1 // loop_footer
      %s25 = sadd.s32 1, %s21
    $region7: #{tpu_custom_call.1} parent=1 // loop_footer_branch
      %20 = sbr.rel target = $region3
    $region8: #{tpu_custom_call.1} parent=1 // loop_exit
      _
    %1720 = vsyncpa [#allocation3], 1
    %s1721 = scalar_lea.sflag [#allocation3], 1
    %1722 = vsyncpa %s1721, 1
    %1723 = vsyncpa [#allocation6], 1
    %s1724 = scalar_lea.sflag [#allocation6], 1
    %1725 = vsyncpa %s1724, 1
    %1726 = vsyncpa [#allocation9], 1
    %1727 = vsyncpa [#allocation4], 1
    %s1728 = scalar_lea.sflag [#allocation4], 1
    %1729 = vsyncpa %s1728, 1

</llo_original>
